<compile_context>
chip_gen: v7x
topology: tpu7x:2x2x1
jax: 0.10.0
libtpu: 0.0.40
codegen_flags: <defaults>
</compile_context>

<pallas_src>
import functools

import jax
import jax.numpy as jnp
import numpy as np
from jax.experimental import pallas as pl
from jax.experimental.pallas import tpu as pltpu

NUM_PARTS = 6
C_IN = 512
C_OUT = 256
BN_EPS = 1e-5


def _pcb_group_kernel(pooled_ref, w_ref, shift_ref, o_ref):
    """One grid step == one group of parts (all parts in the group fused).

    pooled_ref: (PPG, B, C_IN)     adaptive-pooled features (bf16)
    w_ref:      (PPG, C_IN, C_OUT) per-part 1x1-conv weights, BN scale folded (bf16)
    shift_ref:  (PPG, 1, C_OUT)    folded BN shift (beta - mean*scale), f32
    o_ref:      (B, PPG*C_OUT)     lane-dense slab of the final output
    """
    ppg = pooled_ref.shape[0]
    for p in range(ppg):  # static unroll; each part is one small MXU matmul
        y = jnp.dot(pooled_ref[p], w_ref[p],
                    preferred_element_type=jnp.float32)   # native bf16 MXU, f32 acc
        y = y + shift_ref[p]                               # folded eval-mode BN
        y = jnp.maximum(y, 0.0)                            # ReLU
        o_ref[:, p * C_OUT:(p + 1) * C_OUT] = y.astype(o_ref.dtype)


def _grid_config(num_parts):
    """1 group on single-TC chips (v5e/v6e); 2 CORE_PARALLEL groups on v7x."""
    kind = jax.devices()[0].device_kind.lower()
    is_v7 = ("v7" in kind) or ("7x" in kind)
    if is_v7 and num_parts % 2 == 0:
        return 2, (pltpu.CORE_PARALLEL,)
    return 1, ("arbitrary",)


@functools.partial(jax.jit, static_argnames=("num_parts",))
def pcb_rpp_forward(x, conv_w_folded, bn_shift, *, num_parts=NUM_PARTS):
    """x: (B, C_IN, H, W) NCHW backbone feature map. Returns (B, num_parts*C_OUT) f32.

    conv_w_folded: (P, C_IN, C_OUT) 1x1-conv weight with BN scale folded in.
    bn_shift:      (P, 1, C_OUT)    folded BN shift (f32).
    """
    B, C, H, W = x.shape
    assert C == C_IN
    # TODO(synk): AdaptiveAvgPool2d with H % num_parts != 0 uses ragged bins;
    # only the uniform case is implemented.
    assert H % num_parts == 0
    HB = H // num_parts

    # Adaptive avg pool to (num_parts, 1) in the native NCHW layout (tiny output),
    # then transpose only the pooled tensor and cast to bf16 for the kernel.
    pooled = x.reshape(B, C, num_parts, HB * W).mean(axis=-1)        # (B, C, P) f32
    pooled = jnp.transpose(pooled, (2, 0, 1)).astype(jnp.bfloat16)   # (P, B, C_IN)
    w = conv_w_folded.astype(jnp.bfloat16)                           # (P, C_IN, C_OUT)

    num_groups, dim_sem = _grid_config(num_parts)
    ppg = num_parts // num_groups

    out = pl.pallas_call(
        _pcb_group_kernel,
        out_shape=jax.ShapeDtypeStruct((B, num_parts * C_OUT), jnp.float32),
        grid=(num_groups,),
        in_specs=[
            pl.BlockSpec((ppg, B, C_IN), lambda g: (g, 0, 0)),
            pl.BlockSpec((ppg, C_IN, C_OUT), lambda g: (g, 0, 0)),
            pl.BlockSpec((ppg, 1, C_OUT), lambda g: (g, 0, 0)),
        ],
        out_specs=pl.BlockSpec((B, ppg * C_OUT), lambda g: (0, g)),
        compiler_params=pltpu.CompilerParams(dimension_semantics=dim_sem),
    )(pooled, w, bn_shift)
    return out


def make_params(key, num_parts=NUM_PARTS):
    """Deterministic synthetic parameters mirroring PCB_RPP.__init__ shapes,
    with eval-mode BatchNorm pre-folded: scale into the conv weight, shift kept."""
    ks = jax.random.split(key, 5)
    # nn.Conv2d(512, 256, 1, bias=False).weight is (256, 512, 1, 1); stored here
    # in the transposed matmul form (P, 512, 256).
    conv_w = jax.random.normal(ks[0], (num_parts, C_IN, C_OUT), jnp.float32) * 0.02
    gamma = 1.0 + 0.1 * jax.random.normal(ks[1], (num_parts, 1, C_OUT), jnp.float32)
    beta = 0.1 * jax.random.normal(ks[2], (num_parts, 1, C_OUT), jnp.float32)
    running_mean = 0.05 * jax.random.normal(ks[3], (num_parts, 1, C_OUT), jnp.float32)
    running_var = jnp.abs(1.0 + 0.1 * jax.random.normal(
        ks[4], (num_parts, 1, C_OUT), jnp.float32))
    bn_scale = gamma / jnp.sqrt(running_var + BN_EPS)     # (P, 1, C_OUT)
    bn_shift = beta - running_mean * bn_scale             # (P, 1, C_OUT)
    conv_w_folded = conv_w * bn_scale                     # fold scale over out-channels
    return conv_w_folded, bn_shift


def reference_forward(x, conv_w_folded, bn_shift, num_parts=NUM_PARTS):
    """Pure-JAX f32 reference (mirrors the PyTorch forward, eval-mode BN)."""
    B, C, H, W = x.shape
    HB = H // num_parts
    pooled = x.reshape(B, C, num_parts, HB, W).mean(axis=(3, 4))   # (B, C, P)
    parts = []
    for p in range(num_parts):
        v = pooled[:, :, p] @ conv_w_folded[p] + bn_shift[p]       # (B, C_OUT)
        parts.append(jnp.maximum(v, 0.0))
    return jnp.stack(parts, axis=1).reshape(B, -1)


if __name__ == "__main__":
    key = jax.random.PRNGKey(0)
    kx, kp = jax.random.split(key)

    B, H, W = 2, 12, 4  # small backbone-feature-map spatial size, H % 6 == 0
    x = jax.random.normal(kx, (B, C_IN, H, W), jnp.float32)
    conv_w_folded, bn_shift = make_params(kp)

    out = pcb_rpp_forward(x, conv_w_folded, bn_shift)
    out = jax.block_until_ready(out)

    ref = reference_forward(x, conv_w_folded, bn_shift)
    assert out.shape == (B, NUM_PARTS * C_OUT), out.shape
    # Kernel streams bf16 weights/activations vs the f32 reference -> looser tol.
    np.testing.assert_allclose(np.asarray(out), np.asarray(ref),
                               rtol=2e-2, atol=2e-2)
    print("KERNEL_OK")
</pallas_src>

<mosaic_0001>
module attributes {stable_mosaic.version = 11 : i64} {
  func.func @_pcb_group_kernel(%arg0: i32, %arg1: memref<6x2x512xbf16, #tpu.memory_space<vmem>>, %arg2: memref<6x512x256xbf16, #tpu.memory_space<vmem>>, %arg3: memref<6x1x256xf32, #tpu.memory_space<vmem>>, %arg4: memref<2x1536xf32, #tpu.memory_space<vmem>>) attributes {dimension_semantics = [#tpu.dimension_semantics<arbitrary>], iteration_bounds = array<i64: 1>, scalar_prefetch = 0 : i64, scratch_operands = 0 : i64, tpu.core_type = #tpu.core_type<tc>, window_params = [{transform_indices = @transform_0, window_bounds = array<i64: 6, 2, 512>}, {transform_indices = @transform_1, window_bounds = array<i64: 6, 512, 256>}, {transform_indices = @transform_2, window_bounds = array<i64: 6, 1, 256>}, {transform_indices = @transform_3, window_bounds = array<i64: 2, 1536>}]} {
    %c0 = arith.constant 0 : index
    %c0_0 = arith.constant 0 : index
    %c0_1 = arith.constant 0 : index
    %0 = vector.load %arg1[%c0, %c0_0, %c0_1] : memref<6x2x512xbf16, #tpu.memory_space<vmem>>, vector<1x2x512xbf16>
    %1 = vector.shape_cast %0 : vector<1x2x512xbf16> to vector<2x512xbf16>
    %c0_2 = arith.constant 0 : index
    %c0_3 = arith.constant 0 : index
    %c0_4 = arith.constant 0 : index
    %2 = vector.load %arg2[%c0_2, %c0_3, %c0_4] : memref<6x512x256xbf16, #tpu.memory_space<vmem>>, vector<1x512x256xbf16>
    %3 = vector.shape_cast %2 : vector<1x512x256xbf16> to vector<512x256xbf16>
    %cst = arith.constant dense<0.000000e+00> : vector<2x256xf32>
    %4 = tpu.matmul %1, %3, %cst {dimension_numbers = #tpu.dot_dimension_numbers<[1], [0], [0], [1], [0, 0, 1, 1], [], []>} : vector<2x512xbf16>, vector<512x256xbf16>, vector<2x256xf32> -> vector<2x256xf32>
    %c0_5 = arith.constant 0 : index
    %c0_6 = arith.constant 0 : index
    %c0_7 = arith.constant 0 : index
    %5 = vector.load %arg3[%c0_5, %c0_6, %c0_7] : memref<6x1x256xf32, #tpu.memory_space<vmem>>, vector<1x1x256xf32>
    %6 = vector.shape_cast %5 : vector<1x1x256xf32> to vector<1x256xf32>
    %7 = vector.broadcast %6 : vector<1x256xf32> to vector<2x256xf32>
    %8 = arith.addf %4, %7 : vector<2x256xf32>
    %cst_8 = arith.constant 0.000000e+00 : f32
    %9 = vector.broadcast %cst_8 : f32 to vector<2x256xf32>
    %10 = arith.maximumf %8, %9 : vector<2x256xf32>
    %c0_9 = arith.constant 0 : index
    %c0_10 = arith.constant 0 : index
    %11 = vector.load %arg4[%c0_9, %c0_10] : memref<2x1536xf32, #tpu.memory_space<vmem>>, vector<2x256xf32>
    tpu.vector_store %arg4[%c0_9, %c0_10], %10 {strides = array<i32>} : memref<2x1536xf32, #tpu.memory_space<vmem>>, vector<2x256xf32>,
    %c1 = arith.constant 1 : index
    %c0_11 = arith.constant 0 : index
    %c0_12 = arith.constant 0 : index
    %12 = vector.load %arg1[%c1, %c0_11, %c0_12] : memref<6x2x512xbf16, #tpu.memory_space<vmem>>, vector<1x2x512xbf16>
    %13 = vector.shape_cast %12 : vector<1x2x512xbf16> to vector<2x512xbf16>
    %c1_13 = arith.constant 1 : index
    %c0_14 = arith.constant 0 : index
    %c0_15 = arith.constant 0 : index
    %14 = vector.load %arg2[%c1_13, %c0_14, %c0_15] : memref<6x512x256xbf16, #tpu.memory_space<vmem>>, vector<1x512x256xbf16>
    %15 = vector.shape_cast %14 : vector<1x512x256xbf16> to vector<512x256xbf16>
    %cst_16 = arith.constant dense<0.000000e+00> : vector<2x256xf32>
    %16 = tpu.matmul %13, %15, %cst_16 {dimension_numbers = #tpu.dot_dimension_numbers<[1], [0], [0], [1], [0, 0, 1, 1], [], []>} : vector<2x512xbf16>, vector<512x256xbf16>, vector<2x256xf32> -> vector<2x256xf32>
    %c1_17 = arith.constant 1 : index
    %c0_18 = arith.constant 0 : index
    %c0_19 = arith.constant 0 : index
    %17 = vector.load %arg3[%c1_17, %c0_18, %c0_19] : memref<6x1x256xf32, #tpu.memory_space<vmem>>, vector<1x1x256xf32>
    %18 = vector.shape_cast %17 : vector<1x1x256xf32> to vector<1x256xf32>
    %19 = vector.broadcast %18 : vector<1x256xf32> to vector<2x256xf32>
    %20 = arith.addf %16, %19 : vector<2x256xf32>
    %cst_20 = arith.constant 0.000000e+00 : f32
    %21 = vector.broadcast %cst_20 : f32 to vector<2x256xf32>
    %22 = arith.maximumf %20, %21 : vector<2x256xf32>
    %c0_21 = arith.constant 0 : index
    %c256 = arith.constant 256 : index
    %23 = vector.load %arg4[%c0_21, %c256] : memref<2x1536xf32, #tpu.memory_space<vmem>>, vector<2x256xf32>
    tpu.vector_store %arg4[%c0_21, %c256], %22 {strides = array<i32>} : memref<2x1536xf32, #tpu.memory_space<vmem>>, vector<2x256xf32>,
    %c2 = arith.constant 2 : index
    %c0_22 = arith.constant 0 : index
    %c0_23 = arith.constant 0 : index
    %24 = vector.load %arg1[%c2, %c0_22, %c0_23] : memref<6x2x512xbf16, #tpu.memory_space<vmem>>, vector<1x2x512xbf16>
    %25 = vector.shape_cast %24 : vector<1x2x512xbf16> to vector<2x512xbf16>
    %c2_24 = arith.constant 2 : index
    %c0_25 = arith.constant 0 : index
    %c0_26 = arith.constant 0 : index
    %26 = vector.load %arg2[%c2_24, %c0_25, %c0_26] : memref<6x512x256xbf16, #tpu.memory_space<vmem>>, vector<1x512x256xbf16>
    %27 = vector.shape_cast %26 : vector<1x512x256xbf16> to vector<512x256xbf16>
    %cst_27 = arith.constant dense<0.000000e+00> : vector<2x256xf32>
    %28 = tpu.matmul %25, %27, %cst_27 {dimension_numbers = #tpu.dot_dimension_numbers<[1], [0], [0], [1], [0, 0, 1, 1], [], []>} : vector<2x512xbf16>, vector<512x256xbf16>, vector<2x256xf32> -> vector<2x256xf32>
    %c2_28 = arith.constant 2 : index
    %c0_29 = arith.constant 0 : index
    %c0_30 = arith.constant 0 : index
    %29 = vector.load %arg3[%c2_28, %c0_29, %c0_30] : memref<6x1x256xf32, #tpu.memory_space<vmem>>, vector<1x1x256xf32>
    %30 = vector.shape_cast %29 : vector<1x1x256xf32> to vector<1x256xf32>
    %31 = vector.broadcast %30 : vector<1x256xf32> to vector<2x256xf32>
    %32 = arith.addf %28, %31 : vector<2x256xf32>
    %cst_31 = arith.constant 0.000000e+00 : f32
    %33 = vector.broadcast %cst_31 : f32 to vector<2x256xf32>
    %34 = arith.maximumf %32, %33 : vector<2x256xf32>
    %c0_32 = arith.constant 0 : index
    %c512 = arith.constant 512 : index
    %35 = vector.load %arg4[%c0_32, %c512] : memref<2x1536xf32, #tpu.memory_space<vmem>>, vector<2x256xf32>
    tpu.vector_store %arg4[%c0_32, %c512], %34 {strides = array<i32>} : memref<2x1536xf32, #tpu.memory_space<vmem>>, vector<2x256xf32>,
    %c3 = arith.constant 3 : index
    %c0_33 = arith.constant 0 : index
    %c0_34 = arith.constant 0 : index
    %36 = vector.load %arg1[%c3, %c0_33, %c0_34] : memref<6x2x512xbf16, #tpu.memory_space<vmem>>, vector<1x2x512xbf16>
    %37 = vector.shape_cast %36 : vector<1x2x512xbf16> to vector<2x512xbf16>
    %c3_35 = arith.constant 3 : index
    %c0_36 = arith.constant 0 : index
    %c0_37 = arith.constant 0 : index
    %38 = vector.load %arg2[%c3_35, %c0_36, %c0_37] : memref<6x512x256xbf16, #tpu.memory_space<vmem>>, vector<1x512x256xbf16>
    %39 = vector.shape_cast %38 : vector<1x512x256xbf16> to vector<512x256xbf16>
    %cst_38 = arith.constant dense<0.000000e+00> : vector<2x256xf32>
    %40 = tpu.matmul %37, %39, %cst_38 {dimension_numbers = #tpu.dot_dimension_numbers<[1], [0], [0], [1], [0, 0, 1, 1], [], []>} : vector<2x512xbf16>, vector<512x256xbf16>, vector<2x256xf32> -> vector<2x256xf32>
    %c3_39 = arith.constant 3 : index
    %c0_40 = arith.constant 0 : index
    %c0_41 = arith.constant 0 : index
    %41 = vector.load %arg3[%c3_39, %c0_40, %c0_41] : memref<6x1x256xf32, #tpu.memory_space<vmem>>, vector<1x1x256xf32>
    %42 = vector.shape_cast %41 : vector<1x1x256xf32> to vector<1x256xf32>
    %43 = vector.broadcast %42 : vector<1x256xf32> to vector<2x256xf32>
    %44 = arith.addf %40, %43 : vector<2x256xf32>
    %cst_42 = arith.constant 0.000000e+00 : f32
    %45 = vector.broadcast %cst_42 : f32 to vector<2x256xf32>
    %46 = arith.maximumf %44, %45 : vector<2x256xf32>
    %c0_43 = arith.constant 0 : index
    %c768 = arith.constant 768 : index
    %47 = vector.load %arg4[%c0_43, %c768] : memref<2x1536xf32, #tpu.memory_space<vmem>>, vector<2x256xf32>
    tpu.vector_store %arg4[%c0_43, %c768], %46 {strides = array<i32>} : memref<2x1536xf32, #tpu.memory_space<vmem>>, vector<2x256xf32>,
    %c4 = arith.constant 4 : index
    %c0_44 = arith.constant 0 : index
    %c0_45 = arith.constant 0 : index
    %48 = vector.load %arg1[%c4, %c0_44, %c0_45] : memref<6x2x512xbf16, #tpu.memory_space<vmem>>, vector<1x2x512xbf16>
    %49 = vector.shape_cast %48 : vector<1x2x512xbf16> to vector<2x512xbf16>
    %c4_46 = arith.constant 4 : index
    %c0_47 = arith.constant 0 : index
    %c0_48 = arith.constant 0 : index
    %50 = vector.load %arg2[%c4_46, %c0_47, %c0_48] : memref<6x512x256xbf16, #tpu.memory_space<vmem>>, vector<1x512x256xbf16>
    %51 = vector.shape_cast %50 : vector<1x512x256xbf16> to vector<512x256xbf16>
    %cst_49 = arith.constant dense<0.000000e+00> : vector<2x256xf32>
    %52 = tpu.matmul %49, %51, %cst_49 {dimension_numbers = #tpu.dot_dimension_numbers<[1], [0], [0], [1], [0, 0, 1, 1], [], []>} : vector<2x512xbf16>, vector<512x256xbf16>, vector<2x256xf32> -> vector<2x256xf32>
    %c4_50 = arith.constant 4 : index
    %c0_51 = arith.constant 0 : index
    %c0_52 = arith.constant 0 : index
    %53 = vector.load %arg3[%c4_50, %c0_51, %c0_52] : memref<6x1x256xf32, #tpu.memory_space<vmem>>, vector<1x1x256xf32>
    %54 = vector.shape_cast %53 : vector<1x1x256xf32> to vector<1x256xf32>
    %55 = vector.broadcast %54 : vector<1x256xf32> to vector<2x256xf32>
    %56 = arith.addf %52, %55 : vector<2x256xf32>
    %cst_53 = arith.constant 0.000000e+00 : f32
    %57 = vector.broadcast %cst_53 : f32 to vector<2x256xf32>
    %58 = arith.maximumf %56, %57 : vector<2x256xf32>
    %c0_54 = arith.constant 0 : index
    %c1024 = arith.constant 1024 : index
    %59 = vector.load %arg4[%c0_54, %c1024] : memref<2x1536xf32, #tpu.memory_space<vmem>>, vector<2x256xf32>
    tpu.vector_store %arg4[%c0_54, %c1024], %58 {strides = array<i32>} : memref<2x1536xf32, #tpu.memory_space<vmem>>, vector<2x256xf32>,
    %c5 = arith.constant 5 : index
    %c0_55 = arith.constant 0 : index
    %c0_56 = arith.constant 0 : index
    %60 = vector.load %arg1[%c5, %c0_55, %c0_56] : memref<6x2x512xbf16, #tpu.memory_space<vmem>>, vector<1x2x512xbf16>
    %61 = vector.shape_cast %60 : vector<1x2x512xbf16> to vector<2x512xbf16>
    %c5_57 = arith.constant 5 : index
    %c0_58 = arith.constant 0 : index
    %c0_59 = arith.constant 0 : index
    %62 = vector.load %arg2[%c5_57, %c0_58, %c0_59] : memref<6x512x256xbf16, #tpu.memory_space<vmem>>, vector<1x512x256xbf16>
    %63 = vector.shape_cast %62 : vector<1x512x256xbf16> to vector<512x256xbf16>
    %cst_60 = arith.constant dense<0.000000e+00> : vector<2x256xf32>
    %64 = tpu.matmul %61, %63, %cst_60 {dimension_numbers = #tpu.dot_dimension_numbers<[1], [0], [0], [1], [0, 0, 1, 1], [], []>} : vector<2x512xbf16>, vector<512x256xbf16>, vector<2x256xf32> -> vector<2x256xf32>
    %c5_61 = arith.constant 5 : index
    %c0_62 = arith.constant 0 : index
    %c0_63 = arith.constant 0 : index
    %65 = vector.load %arg3[%c5_61, %c0_62, %c0_63] : memref<6x1x256xf32, #tpu.memory_space<vmem>>, vector<1x1x256xf32>
    %66 = vector.shape_cast %65 : vector<1x1x256xf32> to vector<1x256xf32>
    %67 = vector.broadcast %66 : vector<1x256xf32> to vector<2x256xf32>
    %68 = arith.addf %64, %67 : vector<2x256xf32>
    %cst_64 = arith.constant 0.000000e+00 : f32
    %69 = vector.broadcast %cst_64 : f32 to vector<2x256xf32>
    %70 = arith.maximumf %68, %69 : vector<2x256xf32>
    %c0_65 = arith.constant 0 : index
    %c1280 = arith.constant 1280 : index
    %71 = vector.load %arg4[%c0_65, %c1280] : memref<2x1536xf32, #tpu.memory_space<vmem>>, vector<2x256xf32>
    tpu.vector_store %arg4[%c0_65, %c1280], %70 {strides = array<i32>} : memref<2x1536xf32, #tpu.memory_space<vmem>>, vector<2x256xf32>,
    return
  }
  func.func @transform_0(%arg0: i32) -> (i32, i32, i32) {
    %c0_i32 = arith.constant 0 : i32
    %c0_i32_0 = arith.constant 0 : i32
    %c0_i32_1 = arith.constant 0 : i32
    return %arg0, %c0_i32, %c0_i32_0 : i32, i32, i32
  }
  func.func @transform_1(%arg0: i32) -> (i32, i32, i32) {
    %c0_i32 = arith.constant 0 : i32
    %c0_i32_0 = arith.constant 0 : i32
    %c0_i32_1 = arith.constant 0 : i32
    return %arg0, %c0_i32, %c0_i32_0 : i32, i32, i32
  }
  func.func @transform_2(%arg0: i32) -> (i32, i32, i32) {
    %c0_i32 = arith.constant 0 : i32
    %c0_i32_0 = arith.constant 0 : i32
    %c0_i32_1 = arith.constant 0 : i32
    return %arg0, %c0_i32, %c0_i32_0 : i32, i32, i32
  }
  func.func @transform_3(%arg0: i32) -> (i32, i32) {
    %c0_i32 = arith.constant 0 : i32
    %c0_i32_0 = arith.constant 0 : i32
    return %c0_i32, %arg0 : i32, i32
  }
}

</mosaic_0001>

<llo_original>
// kernel: pcb_rpp_forward.1
$region0: #{pcb_rpp_forward.1}
  #allocation0 [shape = 'u32[]', space=smem, size = 0x4, offset = 0x4, fixed_abs, tag = 'smem constant byte address 0x4 - core index']
  #allocation1 [shape = 'u32[144,128]{1,0:T(1,128)}', space=vmem, size = 0x12000, scoped, tag = 'internal scratch']
  %s0 = inlined_call_operand.vmem [shape: bf16[6,2,512], index: 0, kind: input, shape index: {}]
  %s1 = inlined_call_operand.vmem [shape: bf16[6,512,256], index: 1, kind: input, shape index: {}]
  %s2 = inlined_call_operand.vmem [shape: f32[6,1,256], index: 2, kind: input, shape index: {}]
  %s3 = inlined_call_operand.hbm [shape: f32[2,1536], index: 3, kind: output, shape index: {}]
  %s4 = sld [smem:[#allocation0]]
  $region22: #{pcb_rpp_forward.1} parent=0
    _
  %s6 = ssub.s32 1, %s4
  %s7 = scalar_select 0, %s6, %s4
  $region1: #{pcb_rpp_forward.1} parent=0
    #allocation2 [shape = 'u8[12288]{0}', space=vmem, size = 0x3000, scoped, tag = 'output window, operand 0, single buffered']
    #allocation3 [shape = 's32[1]{0}', space=sflag, size = 0x4, scoped, tag = 'scoped memory for pcb_rpp_forward.1']
    %8 = vsyncpa [#allocation3], 0
    // Predicated region
    $region2: #{pcb_rpp_forward.1} parent=1 // pred_check
      _
    $region3: #{pcb_rpp_forward.1} parent=1 // pred_check_branch
      %10 = sbr.rel (0) target = $region5
    $region4: #{pcb_rpp_forward.1} parent=1 // pred_region
      _
    $region5: #{pcb_rpp_forward.1} parent=1 // pred_fallthru
      _
    // Predicated region
    $region6: #{pcb_rpp_forward.1} parent=1 // pred_check
      _
    $region7: #{pcb_rpp_forward.1} parent=1 // pred_check_branch
      %12 = sbr.rel (0) target = $region9
    $region8: #{pcb_rpp_forward.1} parent=1 // pred_region
      _
    $region9: #{pcb_rpp_forward.1} parent=1 // pred_fallthru
      _
    // Predicated region
    $region10: #{pcb_rpp_forward.1} parent=1 // pred_check
      _
    $region11: #{pcb_rpp_forward.1} parent=1 // pred_check_branch
      %14 = sbr.rel (0) target = $region13
    $region12: #{pcb_rpp_forward.1} parent=1 // pred_region
      _
    $region13: #{pcb_rpp_forward.1} parent=1 // pred_fallthru
      _
    %v15 = vld [vmem:[%s0] sm:$0xf]
    %v16 = vld [vmem:[%s1] sm:$0xff]
    %v17 = vld [vmem:[%s1 + $0x8] sm:$0xff]
    %v18 = vld [vmem:[%s1 + $0x10] sm:$0xff]
    %v19 = vld [vmem:[%s1 + $0x18] sm:$0xff]
    %v20 = vld [vmem:[%s1 + $0x20] sm:$0xff]
    %v21 = vld [vmem:[%s1 + $0x28] sm:$0xff]
    %v22 = vld [vmem:[%s1 + $0x30] sm:$0xff]
    %v23 = vld [vmem:[%s1 + $0x38] sm:$0xff]
    %v24 = vld [vmem:[%s1 + $0x40] sm:$0xff]
    %v25 = vld [vmem:[%s1 + $0x48] sm:$0xff]
    %v26 = vld [vmem:[%s1 + $0x50] sm:$0xff]
    %v27 = vld [vmem:[%s1 + $0x58] sm:$0xff]
    %v28 = vld [vmem:[%s1 + $0x60] sm:$0xff]
    %v29 = vld [vmem:[%s1 + $0x68] sm:$0xff]
    %v30 = vld [vmem:[%s1 + $0x70] sm:$0xff]
    %v31 = vld [vmem:[%s1 + $0x78] sm:$0xff]
    %v32 = vld [vmem:[%s1 + $0x80] sm:$0xff]
    %v33 = vld [vmem:[%s1 + $0x88] sm:$0xff]
    %v34 = vld [vmem:[%s1 + $0x90] sm:$0xff]
    %v35 = vld [vmem:[%s1 + $0x98] sm:$0xff]
    %v36 = vld [vmem:[%s1 + $0xa0] sm:$0xff]
    %v37 = vld [vmem:[%s1 + $0xa8] sm:$0xff]
    %v38 = vld [vmem:[%s1 + $0xb0] sm:$0xff]
    %v39 = vld [vmem:[%s1 + $0xb8] sm:$0xff]
    %v40 = vld [vmem:[%s1 + $0xc0] sm:$0xff]
    %v41 = vld [vmem:[%s1 + $0xc8] sm:$0xff]
    %v42 = vld [vmem:[%s1 + $0xd0] sm:$0xff]
    %v43 = vld [vmem:[%s1 + $0xd8] sm:$0xff]
    %v44 = vld [vmem:[%s1 + $0xe0] sm:$0xff]
    %v45 = vld [vmem:[%s1 + $0xe8] sm:$0xff]
    %v46 = vld [vmem:[%s1 + $0xf0] sm:$0xff]
    %v47 = vld [vmem:[%s1 + $0xf8] sm:$0xff]
    %v48 = vld [vmem:[%s1 + $0x100] sm:$0xff]
    %v49 = vld [vmem:[%s1 + $0x108] sm:$0xff]
    %v50 = vld [vmem:[%s1 + $0x110] sm:$0xff]
    %v51 = vld [vmem:[%s1 + $0x118] sm:$0xff]
    %v52 = vld [vmem:[%s1 + $0x120] sm:$0xff]
    %v53 = vld [vmem:[%s1 + $0x128] sm:$0xff]
    %v54 = vld [vmem:[%s1 + $0x130] sm:$0xff]
    %v55 = vld [vmem:[%s1 + $0x138] sm:$0xff]
    %v56 = vld [vmem:[%s1 + $0x140] sm:$0xff]
    %v57 = vld [vmem:[%s1 + $0x148] sm:$0xff]
    %v58 = vld [vmem:[%s1 + $0x150] sm:$0xff]
    %v59 = vld [vmem:[%s1 + $0x158] sm:$0xff]
    %v60 = vld [vmem:[%s1 + $0x160] sm:$0xff]
    %v61 = vld [vmem:[%s1 + $0x168] sm:$0xff]
    %v62 = vld [vmem:[%s1 + $0x170] sm:$0xff]
    %v63 = vld [vmem:[%s1 + $0x178] sm:$0xff]
    %v64 = vld [vmem:[%s1 + $0x180] sm:$0xff]
    %v65 = vld [vmem:[%s1 + $0x188] sm:$0xff]
    %v66 = vld [vmem:[%s1 + $0x190] sm:$0xff]
    %v67 = vld [vmem:[%s1 + $0x198] sm:$0xff]
    %v68 = vld [vmem:[%s1 + $0x1a0] sm:$0xff]
    %v69 = vld [vmem:[%s1 + $0x1a8] sm:$0xff]
    %v70 = vld [vmem:[%s1 + $0x1b0] sm:$0xff]
    %v71 = vld [vmem:[%s1 + $0x1b8] sm:$0xff]
    %v72 = vld [vmem:[%s1 + $0x1c0] sm:$0xff]
    %v73 = vld [vmem:[%s1 + $0x1c8] sm:$0xff]
    %v74 = vld [vmem:[%s1 + $0x1d0] sm:$0xff]
    %v75 = vld [vmem:[%s1 + $0x1d8] sm:$0xff]
    %v76 = vld [vmem:[%s1 + $0x1e0] sm:$0xff]
    %v77 = vld [vmem:[%s1 + $0x1e8] sm:$0xff]
    %v78 = vld [vmem:[%s1 + $0x1f0] sm:$0xff]
    %v79 = vld [vmem:[%s1 + $0x1f8] sm:$0xff]
    %v80 = vld [vmem:[%s2] sm:$0x3]
    %v82 = vlaneseq
    %v83 = vshrl.u32 %v82, 7
    %v84 = vsub.s32 0, %v83
    %v85 = vrot.slane %v80, %v84
    %v86 = vlaneseq
    %v87 = vshrl.u32 %v86, 7
    %v88 = vsub.s32 1, %v87
    %v89 = vrot.slane %v80, %v88
    %v94 = vunpack.c.l.s4 1966171168
    %v95 = vunpack.c.0.s8 %v94
    %v96 = vlaneseq
    %v97 = vshrl.u32 %v96, 7
    %v98 = vsub.s32 %v95, %v97
    %v99 = vrot.slane %v15, %v98
    %v100 = vcombine.high %v99, %v99
    %v102 = vunpack.c.l.s4 1966171168
    %v103 = vunpack.c.0.s8 %v102
    %v104 = vlaneseq
    %v105 = vshrl.u32 %v104, 7
    %v106 = vsub.s32 %v103, %v105
    %v107 = vrot.slane %v99, %v106
    %v109 = vunpack.c.l.s4 1966171168
    %v110 = vunpack.c.0.s8 %v109
    %v111 = vlaneseq
    %v112 = vshrl.u32 %v111, 7
    %v113 = vsub.s32 %v110, %v112
    %v114 = vrot.slane %v100, %v113
    %v115 = vcombine.high %v107, %v107
    %v116 = vcombine.high %v114, %v114
    %v185 = vunpack.c.l.b16 %v16
    %v186 = vunpack.c.h.b16 %v16
    %v187 = vunpack.c.l.b16 %v17
    %v188 = vunpack.c.h.b16 %v17
    %v189 = vunpack.c.l.b16 %v18
    %v190 = vunpack.c.h.b16 %v18
    %v191 = vunpack.c.l.b16 %v19
    %v192 = vunpack.c.h.b16 %v19
    %v193 = vunpack.c.l.b16 %v20
    %v194 = vunpack.c.h.b16 %v20
    %v195 = vunpack.c.l.b16 %v21
    %v196 = vunpack.c.h.b16 %v21
    %v197 = vunpack.c.l.b16 %v22
    %v198 = vunpack.c.h.b16 %v22
    %v199 = vunpack.c.l.b16 %v23
    %v200 = vunpack.c.h.b16 %v23
    %v201 = vunpack.c.l.b16 %v24
    %v202 = vunpack.c.h.b16 %v24
    %v203 = vunpack.c.l.b16 %v25
    %v204 = vunpack.c.h.b16 %v25
    %v205 = vunpack.c.l.b16 %v26
    %v206 = vunpack.c.h.b16 %v26
    %v207 = vunpack.c.l.b16 %v27
    %v208 = vunpack.c.h.b16 %v27
    %v209 = vunpack.c.l.b16 %v28
    %v210 = vunpack.c.h.b16 %v28
    %v211 = vunpack.c.l.b16 %v29
    %v212 = vunpack.c.h.b16 %v29
    %v213 = vunpack.c.l.b16 %v30
    %v214 = vunpack.c.h.b16 %v30
    %v215 = vunpack.c.l.b16 %v31
    %v216 = vunpack.c.h.b16 %v31
    %v217 = vunpack.c.l.b16 %v32
    %v218 = vunpack.c.h.b16 %v32
    %v219 = vunpack.c.l.b16 %v33
    %v220 = vunpack.c.h.b16 %v33
    %v221 = vunpack.c.l.b16 %v34
    %v222 = vunpack.c.h.b16 %v34
    %v223 = vunpack.c.l.b16 %v35
    %v224 = vunpack.c.h.b16 %v35
    %v225 = vunpack.c.l.b16 %v36
    %v226 = vunpack.c.h.b16 %v36
    %v227 = vunpack.c.l.b16 %v37
    %v228 = vunpack.c.h.b16 %v37
    %v229 = vunpack.c.l.b16 %v38
    %v230 = vunpack.c.h.b16 %v38
    %v231 = vunpack.c.l.b16 %v39
    %v232 = vunpack.c.h.b16 %v39
    %v233 = vunpack.c.l.b16 %v40
    %v234 = vunpack.c.h.b16 %v40
    %v235 = vunpack.c.l.b16 %v41
    %v236 = vunpack.c.h.b16 %v41
    %v237 = vunpack.c.l.b16 %v42
    %v238 = vunpack.c.h.b16 %v42
    %v239 = vunpack.c.l.b16 %v43
    %v240 = vunpack.c.h.b16 %v43
    %v241 = vunpack.c.l.b16 %v44
    %v242 = vunpack.c.h.b16 %v44
    %v243 = vunpack.c.l.b16 %v45
    %v244 = vunpack.c.h.b16 %v45
    %v245 = vunpack.c.l.b16 %v46
    %v246 = vunpack.c.h.b16 %v46
    %v247 = vunpack.c.l.b16 %v47
    %v248 = vunpack.c.h.b16 %v47
    %v249 = vunpack.c.l.b16 %v48
    %v250 = vunpack.c.h.b16 %v48
    %v251 = vunpack.c.l.b16 %v49
    %v252 = vunpack.c.h.b16 %v49
    %v253 = vunpack.c.l.b16 %v50
    %v254 = vunpack.c.h.b16 %v50
    %v255 = vunpack.c.l.b16 %v51
    %v256 = vunpack.c.h.b16 %v51
    %v257 = vunpack.c.l.b16 %v52
    %v258 = vunpack.c.h.b16 %v52
    %v259 = vunpack.c.l.b16 %v53
    %v260 = vunpack.c.h.b16 %v53
    %v261 = vunpack.c.l.b16 %v54
    %v262 = vunpack.c.h.b16 %v54
    %v263 = vunpack.c.l.b16 %v55
    %v264 = vunpack.c.h.b16 %v55
    %v265 = vunpack.c.l.b16 %v56
    %v266 = vunpack.c.h.b16 %v56
    %v267 = vunpack.c.l.b16 %v57
    %v268 = vunpack.c.h.b16 %v57
    %v269 = vunpack.c.l.b16 %v58
    %v270 = vunpack.c.h.b16 %v58
    %v271 = vunpack.c.l.b16 %v59
    %v272 = vunpack.c.h.b16 %v59
    %v273 = vunpack.c.l.b16 %v60
    %v274 = vunpack.c.h.b16 %v60
    %v275 = vunpack.c.l.b16 %v61
    %v276 = vunpack.c.h.b16 %v61
    %v277 = vunpack.c.l.b16 %v62
    %v278 = vunpack.c.h.b16 %v62
    %v279 = vunpack.c.l.b16 %v63
    %v280 = vunpack.c.h.b16 %v63
    %v281 = vunpack.c.l.b16 %v64
    %v282 = vunpack.c.h.b16 %v64
    %v283 = vunpack.c.l.b16 %v65
    %v284 = vunpack.c.h.b16 %v65
    %v285 = vunpack.c.l.b16 %v66
    %v286 = vunpack.c.h.b16 %v66
    %v287 = vunpack.c.l.b16 %v67
    %v288 = vunpack.c.h.b16 %v67
    %v289 = vunpack.c.l.b16 %v68
    %v290 = vunpack.c.h.b16 %v68
    %v291 = vunpack.c.l.b16 %v69
    %v292 = vunpack.c.h.b16 %v69
    %v293 = vunpack.c.l.b16 %v70
    %v294 = vunpack.c.h.b16 %v70
    %v295 = vunpack.c.l.b16 %v71
    %v296 = vunpack.c.h.b16 %v71
    %v297 = vunpack.c.l.b16 %v72
    %v298 = vunpack.c.h.b16 %v72
    %v299 = vunpack.c.l.b16 %v73
    %v300 = vunpack.c.h.b16 %v73
    %v301 = vunpack.c.l.b16 %v74
    %v302 = vunpack.c.h.b16 %v74
    %v303 = vunpack.c.l.b16 %v75
    %v304 = vunpack.c.h.b16 %v75
    %v305 = vunpack.c.l.b16 %v76
    %v306 = vunpack.c.h.b16 %v76
    %v307 = vunpack.c.l.b16 %v77
    %v308 = vunpack.c.h.b16 %v77
    %v309 = vunpack.c.l.b16 %v78
    %v310 = vunpack.c.h.b16 %v78
    %v311 = vunpack.c.l.b16 %v79
    %v312 = vunpack.c.h.b16 %v79
    %v313 = vpack.c.b16 %v187, %v185
    %v314 = vpack.c.b16 %v188, %v186
    %v315 = vpack.c.b16 %v191, %v189
    %v316 = vpack.c.b16 %v192, %v190
    %v317 = vpack.c.b16 %v195, %v193
    %v318 = vpack.c.b16 %v196, %v194
    %v319 = vpack.c.b16 %v199, %v197
    %v320 = vpack.c.b16 %v200, %v198
    %v321 = vpack.c.b16 %v203, %v201
    %v322 = vpack.c.b16 %v204, %v202
    %v323 = vpack.c.b16 %v207, %v205
    %v324 = vpack.c.b16 %v208, %v206
    %v325 = vpack.c.b16 %v211, %v209
    %v326 = vpack.c.b16 %v212, %v210
    %v327 = vpack.c.b16 %v215, %v213
    %v328 = vpack.c.b16 %v216, %v214
    %v329 = vpack.c.b16 %v219, %v217
    %v330 = vpack.c.b16 %v220, %v218
    %v331 = vpack.c.b16 %v223, %v221
    %v332 = vpack.c.b16 %v224, %v222
    %v333 = vpack.c.b16 %v227, %v225
    %v334 = vpack.c.b16 %v228, %v226
    %v335 = vpack.c.b16 %v231, %v229
    %v336 = vpack.c.b16 %v232, %v230
    %v337 = vpack.c.b16 %v235, %v233
    %v338 = vpack.c.b16 %v236, %v234
    %v339 = vpack.c.b16 %v239, %v237
    %v340 = vpack.c.b16 %v240, %v238
    %v341 = vpack.c.b16 %v243, %v241
    %v342 = vpack.c.b16 %v244, %v242
    %v343 = vpack.c.b16 %v247, %v245
    %v344 = vpack.c.b16 %v248, %v246
    %v345 = vpack.c.b16 %v251, %v249
    %v346 = vpack.c.b16 %v252, %v250
    %v347 = vpack.c.b16 %v255, %v253
    %v348 = vpack.c.b16 %v256, %v254
    %v349 = vpack.c.b16 %v259, %v257
    %v350 = vpack.c.b16 %v260, %v258
    %v351 = vpack.c.b16 %v263, %v261
    %v352 = vpack.c.b16 %v264, %v262
    %v353 = vpack.c.b16 %v267, %v265
    %v354 = vpack.c.b16 %v268, %v266
    %v355 = vpack.c.b16 %v271, %v269
    %v356 = vpack.c.b16 %v272, %v270
    %v357 = vpack.c.b16 %v275, %v273
    %v358 = vpack.c.b16 %v276, %v274
    %v359 = vpack.c.b16 %v279, %v277
    %v360 = vpack.c.b16 %v280, %v278
    %v361 = vpack.c.b16 %v283, %v281
    %v362 = vpack.c.b16 %v284, %v282
    %v363 = vpack.c.b16 %v287, %v285
    %v364 = vpack.c.b16 %v288, %v286
    %v365 = vpack.c.b16 %v291, %v289
    %v366 = vpack.c.b16 %v292, %v290
    %v367 = vpack.c.b16 %v295, %v293
    %v368 = vpack.c.b16 %v296, %v294
    %v369 = vpack.c.b16 %v299, %v297
    %v370 = vpack.c.b16 %v300, %v298
    %v371 = vpack.c.b16 %v303, %v301
    %v372 = vpack.c.b16 %v304, %v302
    %v373 = vpack.c.b16 %v307, %v305
    %v374 = vpack.c.b16 %v308, %v306
    %v375 = vpack.c.b16 %v311, %v309
    %v376 = vpack.c.b16 %v312, %v310
    %441 = vmatprep.subr.bf16.mxu0 %v314
    %442 = vmatpush1.bf16.msra.mxu0 %v313
    %443 = vmatprep.subr.bf16.mxu0 %v316
    %444 = vmatpush1.bf16.msra.mxu0 %v315
    %445 = vmatprep.subr.bf16.mxu0 %v318
    %446 = vmatpush1.bf16.msra.mxu0 %v317
    %447 = vmatprep.subr.bf16.mxu0 %v320
    %448 = vmatpush1.bf16.msra.mxu0 %v319
    %449 = vmatprep.subr.bf16.mxu0 %v322
    %450 = vmatpush1.bf16.msra.mxu0 %v321
    %451 = vmatprep.subr.bf16.mxu0 %v324
    %452 = vmatpush1.bf16.msra.mxu0 %v323
    %453 = vmatprep.subr.bf16.mxu0 %v326
    %454 = vmatpush1.bf16.msra.mxu0 %v325
    %455 = vmatprep.subr.bf16.mxu0 %v328
    %456 = vmatpush1.bf16.msra.mxu0 %v327
    %457 = vmatprep.subr.bf16.mxu0 %v330
    %458 = vmatpush1.bf16.msra.mxu0 %v329
    %459 = vmatprep.subr.bf16.mxu0 %v332
    %460 = vmatpush1.bf16.msra.mxu0 %v331
    %461 = vmatprep.subr.bf16.mxu0 %v334
    %462 = vmatpush1.bf16.msra.mxu0 %v333
    %463 = vmatprep.subr.bf16.mxu0 %v336
    %464 = vmatpush1.bf16.msra.mxu0 %v335
    %465 = vmatprep.subr.bf16.mxu0 %v338
    %466 = vmatpush1.bf16.msra.mxu0 %v337
    %467 = vmatprep.subr.bf16.mxu0 %v340
    %468 = vmatpush1.bf16.msra.mxu0 %v339
    %469 = vmatprep.subr.bf16.mxu0 %v342
    %470 = vmatpush1.bf16.msra.mxu0 %v341
    %471 = vmatprep.subr.bf16.mxu0 %v344
    %472 = vmatpush1.bf16.msra.mxu0 %v343
    %473 = vmatprep.mubr.bf16.mxu0 %v114
    %474 = vmatmul.mubr.bf16.gmra.mrb[0].mxu0 %v107
    %v475 = vpop.f32.mrb[0].mxu0
    %v476 = vadd.f32 %v85, %v475
    %v477 = vpop.f32.mrb[0].mxu0
    %v478 = vadd.f32 %v89, %v477
    %v479 = vpop.f32.mrb[0].mxu0
    %v480 = vpop.f32.mrb[0].mxu0
    %481 = vdwg.mxu0
    %482 = vmatprep.subr.bf16.mxu0 %v346
    %483 = vmatpush1.bf16.msra.mxu0 %v345
    %484 = vmatprep.subr.bf16.mxu0 %v348
    %485 = vmatpush1.bf16.msra.mxu0 %v347
    %486 = vmatprep.subr.bf16.mxu0 %v350
    %487 = vmatpush1.bf16.msra.mxu0 %v349
    %488 = vmatprep.subr.bf16.mxu0 %v352
    %489 = vmatpush1.bf16.msra.mxu0 %v351
    %490 = vmatprep.subr.bf16.mxu0 %v354
    %491 = vmatpush1.bf16.msra.mxu0 %v353
    %492 = vmatprep.subr.bf16.mxu0 %v356
    %493 = vmatpush1.bf16.msra.mxu0 %v355
    %494 = vmatprep.subr.bf16.mxu0 %v358
    %495 = vmatpush1.bf16.msra.mxu0 %v357
    %496 = vmatprep.subr.bf16.mxu0 %v360
    %497 = vmatpush1.bf16.msra.mxu0 %v359
    %498 = vmatprep.subr.bf16.mxu0 %v362
    %499 = vmatpush1.bf16.msra.mxu0 %v361
    %500 = vmatprep.subr.bf16.mxu0 %v364
    %501 = vmatpush1.bf16.msra.mxu0 %v363
    %502 = vmatprep.subr.bf16.mxu0 %v366
    %503 = vmatpush1.bf16.msra.mxu0 %v365
    %504 = vmatprep.subr.bf16.mxu0 %v368
    %505 = vmatpush1.bf16.msra.mxu0 %v367
    %506 = vmatprep.subr.bf16.mxu0 %v370
    %507 = vmatpush1.bf16.msra.mxu0 %v369
    %508 = vmatprep.subr.bf16.mxu0 %v372
    %509 = vmatpush1.bf16.msra.mxu0 %v371
    %510 = vmatprep.subr.bf16.mxu0 %v374
    %511 = vmatpush1.bf16.msra.mxu0 %v373
    %512 = vmatprep.subr.bf16.mxu0 %v376
    %513 = vmatpush1.bf16.msra.mxu0 %v375
    %514 = vmatprep.mubr.bf16.mxu0 %v116
    %515 = vmatmul.mubr.bf16.gmra.mrb[0].mxu0 %v115
    %v516 = vpop.f32.mrb[0].mxu0
    %v517 = vadd.f32 %v476, %v516
    %v518 = vpop.f32.mrb[0].mxu0
    %v519 = vadd.f32 %v478, %v518
    %v520 = vpop.f32.mrb[0].mxu0
    %v521 = vpop.f32.mrb[0].mxu0
    %522 = vdwg.mxu0
    %v523 = vmax.f32 %v517, 0.0
    %v524 = vmax.f32 %v519, 0.0
    %v527 = vcombine.low %v523, %v524
    %v529 = vunpack.c.l.s4 1983009808
    %v530 = vunpack.c.0.s8 %v529
    %v531 = vlaneseq
    %v532 = vshrl.u32 %v531, 7
    %v533 = vsub.s32 %v530, %v532
    %v534 = vrot.slane %v527, %v533
    %536 = vst [vmem:[#allocation2] sm:$0xf] %v534
    %s537 = scalar_lea.vmem %s0, 4
    %v538 = vld [vmem:[%s537] sm:$0xf]
    %s539 = scalar_lea.vmem %s1, 512
    %v540 = vld [vmem:[%s539] sm:$0xff]
    %v541 = vld [vmem:[%s539 + $0x8] sm:$0xff]
    %v542 = vld [vmem:[%s539 + $0x10] sm:$0xff]
    %v543 = vld [vmem:[%s539 + $0x18] sm:$0xff]
    %v544 = vld [vmem:[%s539 + $0x20] sm:$0xff]
    %v545 = vld [vmem:[%s539 + $0x28] sm:$0xff]
    %v546 = vld [vmem:[%s539 + $0x30] sm:$0xff]
    %v547 = vld [vmem:[%s539 + $0x38] sm:$0xff]
    %v548 = vld [vmem:[%s539 + $0x40] sm:$0xff]
    %v549 = vld [vmem:[%s539 + $0x48] sm:$0xff]
    %v550 = vld [vmem:[%s539 + $0x50] sm:$0xff]
    %v551 = vld [vmem:[%s539 + $0x58] sm:$0xff]
    %v552 = vld [vmem:[%s539 + $0x60] sm:$0xff]
    %v553 = vld [vmem:[%s539 + $0x68] sm:$0xff]
    %v554 = vld [vmem:[%s539 + $0x70] sm:$0xff]
    %v555 = vld [vmem:[%s539 + $0x78] sm:$0xff]
    %v556 = vld [vmem:[%s539 + $0x80] sm:$0xff]
    %v557 = vld [vmem:[%s539 + $0x88] sm:$0xff]
    %v558 = vld [vmem:[%s539 + $0x90] sm:$0xff]
    %v559 = vld [vmem:[%s539 + $0x98] sm:$0xff]
    %v560 = vld [vmem:[%s539 + $0xa0] sm:$0xff]
    %v561 = vld [vmem:[%s539 + $0xa8] sm:$0xff]
    %v562 = vld [vmem:[%s539 + $0xb0] sm:$0xff]
    %v563 = vld [vmem:[%s539 + $0xb8] sm:$0xff]
    %v564 = vld [vmem:[%s539 + $0xc0] sm:$0xff]
    %v565 = vld [vmem:[%s539 + $0xc8] sm:$0xff]
    %v566 = vld [vmem:[%s539 + $0xd0] sm:$0xff]
    %v567 = vld [vmem:[%s539 + $0xd8] sm:$0xff]
    %v568 = vld [vmem:[%s539 + $0xe0] sm:$0xff]
    %v569 = vld [vmem:[%s539 + $0xe8] sm:$0xff]
    %v570 = vld [vmem:[%s539 + $0xf0] sm:$0xff]
    %v571 = vld [vmem:[%s539 + $0xf8] sm:$0xff]
    %v572 = vld [vmem:[%s539 + $0x100] sm:$0xff]
    %v573 = vld [vmem:[%s539 + $0x108] sm:$0xff]
    %v574 = vld [vmem:[%s539 + $0x110] sm:$0xff]
    %v575 = vld [vmem:[%s539 + $0x118] sm:$0xff]
    %v576 = vld [vmem:[%s539 + $0x120] sm:$0xff]
    %v577 = vld [vmem:[%s539 + $0x128] sm:$0xff]
    %v578 = vld [vmem:[%s539 + $0x130] sm:$0xff]
    %v579 = vld [vmem:[%s539 + $0x138] sm:$0xff]
    %v580 = vld [vmem:[%s539 + $0x140] sm:$0xff]
    %v581 = vld [vmem:[%s539 + $0x148] sm:$0xff]
    %v582 = vld [vmem:[%s539 + $0x150] sm:$0xff]
    %v583 = vld [vmem:[%s539 + $0x158] sm:$0xff]
    %v584 = vld [vmem:[%s539 + $0x160] sm:$0xff]
    %v585 = vld [vmem:[%s539 + $0x168] sm:$0xff]
    %v586 = vld [vmem:[%s539 + $0x170] sm:$0xff]
    %v587 = vld [vmem:[%s539 + $0x178] sm:$0xff]
    %v588 = vld [vmem:[%s539 + $0x180] sm:$0xff]
    %v589 = vld [vmem:[%s539 + $0x188] sm:$0xff]
    %v590 = vld [vmem:[%s539 + $0x190] sm:$0xff]
    %v591 = vld [vmem:[%s539 + $0x198] sm:$0xff]
    %v592 = vld [vmem:[%s539 + $0x1a0] sm:$0xff]
    %v593 = vld [vmem:[%s539 + $0x1a8] sm:$0xff]
    %v594 = vld [vmem:[%s539 + $0x1b0] sm:$0xff]
    %v595 = vld [vmem:[%s539 + $0x1b8] sm:$0xff]
    %v596 = vld [vmem:[%s539 + $0x1c0] sm:$0xff]
    %v597 = vld [vmem:[%s539 + $0x1c8] sm:$0xff]
    %v598 = vld [vmem:[%s539 + $0x1d0] sm:$0xff]
    %v599 = vld [vmem:[%s539 + $0x1d8] sm:$0xff]
    %v600 = vld [vmem:[%s539 + $0x1e0] sm:$0xff]
    %v601 = vld [vmem:[%s539 + $0x1e8] sm:$0xff]
    %v602 = vld [vmem:[%s539 + $0x1f0] sm:$0xff]
    %v603 = vld [vmem:[%s539 + $0x1f8] sm:$0xff]
    %s604 = scalar_lea.vmem %s2, 2
    %v605 = vld [vmem:[%s604] sm:$0x3]
    %v607 = vlaneseq
    %v608 = vshrl.u32 %v607, 7
    %v609 = vsub.s32 0, %v608
    %v610 = vrot.slane %v605, %v609
    %v611 = vlaneseq
    %v612 = vshrl.u32 %v611, 7
    %v613 = vsub.s32 1, %v612
    %v614 = vrot.slane %v605, %v613
    %v619 = vunpack.c.l.s4 1966171168
    %v620 = vunpack.c.0.s8 %v619
    %v621 = vlaneseq
    %v622 = vshrl.u32 %v621, 7
    %v623 = vsub.s32 %v620, %v622
    %v624 = vrot.slane %v538, %v623
    %v625 = vcombine.high %v624, %v624
    %v627 = vunpack.c.l.s4 1966171168
    %v628 = vunpack.c.0.s8 %v627
    %v629 = vlaneseq
    %v630 = vshrl.u32 %v629, 7
    %v631 = vsub.s32 %v628, %v630
    %v632 = vrot.slane %v624, %v631
    %v634 = vunpack.c.l.s4 1966171168
    %v635 = vunpack.c.0.s8 %v634
    %v636 = vlaneseq
    %v637 = vshrl.u32 %v636, 7
    %v638 = vsub.s32 %v635, %v637
    %v639 = vrot.slane %v625, %v638
    %v640 = vcombine.high %v632, %v632
    %v641 = vcombine.high %v639, %v639
    %v710 = vunpack.c.l.b16 %v540
    %v711 = vunpack.c.h.b16 %v540
    %v712 = vunpack.c.l.b16 %v541
    %v713 = vunpack.c.h.b16 %v541
    %v714 = vunpack.c.l.b16 %v542
    %v715 = vunpack.c.h.b16 %v542
    %v716 = vunpack.c.l.b16 %v543
    %v717 = vunpack.c.h.b16 %v543
    %v718 = vunpack.c.l.b16 %v544
    %v719 = vunpack.c.h.b16 %v544
    %v720 = vunpack.c.l.b16 %v545
    %v721 = vunpack.c.h.b16 %v545
    %v722 = vunpack.c.l.b16 %v546
    %v723 = vunpack.c.h.b16 %v546
    %v724 = vunpack.c.l.b16 %v547
    %v725 = vunpack.c.h.b16 %v547
    %v726 = vunpack.c.l.b16 %v548
    %v727 = vunpack.c.h.b16 %v548
    %v728 = vunpack.c.l.b16 %v549
    %v729 = vunpack.c.h.b16 %v549
    %v730 = vunpack.c.l.b16 %v550
    %v731 = vunpack.c.h.b16 %v550
    %v732 = vunpack.c.l.b16 %v551
    %v733 = vunpack.c.h.b16 %v551
    %v734 = vunpack.c.l.b16 %v552
    %v735 = vunpack.c.h.b16 %v552
    %v736 = vunpack.c.l.b16 %v553
    %v737 = vunpack.c.h.b16 %v553
    %v738 = vunpack.c.l.b16 %v554
    %v739 = vunpack.c.h.b16 %v554
    %v740 = vunpack.c.l.b16 %v555
    %v741 = vunpack.c.h.b16 %v555
    %v742 = vunpack.c.l.b16 %v556
    %v743 = vunpack.c.h.b16 %v556
    %v744 = vunpack.c.l.b16 %v557
    %v745 = vunpack.c.h.b16 %v557
    %v746 = vunpack.c.l.b16 %v558
    %v747 = vunpack.c.h.b16 %v558
    %v748 = vunpack.c.l.b16 %v559
    %v749 = vunpack.c.h.b16 %v559
    %v750 = vunpack.c.l.b16 %v560
    %v751 = vunpack.c.h.b16 %v560
    %v752 = vunpack.c.l.b16 %v561
    %v753 = vunpack.c.h.b16 %v561
    %v754 = vunpack.c.l.b16 %v562
    %v755 = vunpack.c.h.b16 %v562
    %v756 = vunpack.c.l.b16 %v563
    %v757 = vunpack.c.h.b16 %v563
    %v758 = vunpack.c.l.b16 %v564
    %v759 = vunpack.c.h.b16 %v564
    %v760 = vunpack.c.l.b16 %v565
    %v761 = vunpack.c.h.b16 %v565
    %v762 = vunpack.c.l.b16 %v566
    %v763 = vunpack.c.h.b16 %v566
    %v764 = vunpack.c.l.b16 %v567
    %v765 = vunpack.c.h.b16 %v567
    %v766 = vunpack.c.l.b16 %v568
    %v767 = vunpack.c.h.b16 %v568
    %v768 = vunpack.c.l.b16 %v569
    %v769 = vunpack.c.h.b16 %v569
    %v770 = vunpack.c.l.b16 %v570
    %v771 = vunpack.c.h.b16 %v570
    %v772 = vunpack.c.l.b16 %v571
    %v773 = vunpack.c.h.b16 %v571
    %v774 = vunpack.c.l.b16 %v572
    %v775 = vunpack.c.h.b16 %v572
    %v776 = vunpack.c.l.b16 %v573
    %v777 = vunpack.c.h.b16 %v573
    %v778 = vunpack.c.l.b16 %v574
    %v779 = vunpack.c.h.b16 %v574
    %v780 = vunpack.c.l.b16 %v575
    %v781 = vunpack.c.h.b16 %v575
    %v782 = vunpack.c.l.b16 %v576
    %v783 = vunpack.c.h.b16 %v576
    %v784 = vunpack.c.l.b16 %v577
    %v785 = vunpack.c.h.b16 %v577
    %v786 = vunpack.c.l.b16 %v578
    %v787 = vunpack.c.h.b16 %v578
    %v788 = vunpack.c.l.b16 %v579
    %v789 = vunpack.c.h.b16 %v579
    %v790 = vunpack.c.l.b16 %v580
    %v791 = vunpack.c.h.b16 %v580
    %v792 = vunpack.c.l.b16 %v581
    %v793 = vunpack.c.h.b16 %v581
    %v794 = vunpack.c.l.b16 %v582
    %v795 = vunpack.c.h.b16 %v582
    %v796 = vunpack.c.l.b16 %v583
    %v797 = vunpack.c.h.b16 %v583
    %v798 = vunpack.c.l.b16 %v584
    %v799 = vunpack.c.h.b16 %v584
    %v800 = vunpack.c.l.b16 %v585
    %v801 = vunpack.c.h.b16 %v585
    %v802 = vunpack.c.l.b16 %v586
    %v803 = vunpack.c.h.b16 %v586
    %v804 = vunpack.c.l.b16 %v587
    %v805 = vunpack.c.h.b16 %v587
    %v806 = vunpack.c.l.b16 %v588
    %v807 = vunpack.c.h.b16 %v588
    %v808 = vunpack.c.l.b16 %v589
    %v809 = vunpack.c.h.b16 %v589
    %v810 = vunpack.c.l.b16 %v590
    %v811 = vunpack.c.h.b16 %v590
    %v812 = vunpack.c.l.b16 %v591
    %v813 = vunpack.c.h.b16 %v591
    %v814 = vunpack.c.l.b16 %v592
    %v815 = vunpack.c.h.b16 %v592
    %v816 = vunpack.c.l.b16 %v593
    %v817 = vunpack.c.h.b16 %v593
    %v818 = vunpack.c.l.b16 %v594
    %v819 = vunpack.c.h.b16 %v594
    %v820 = vunpack.c.l.b16 %v595
    %v821 = vunpack.c.h.b16 %v595
    %v822 = vunpack.c.l.b16 %v596
    %v823 = vunpack.c.h.b16 %v596
    %v824 = vunpack.c.l.b16 %v597
    %v825 = vunpack.c.h.b16 %v597
    %v826 = vunpack.c.l.b16 %v598
    %v827 = vunpack.c.h.b16 %v598
    %v828 = vunpack.c.l.b16 %v599
    %v829 = vunpack.c.h.b16 %v599
    %v830 = vunpack.c.l.b16 %v600
    %v831 = vunpack.c.h.b16 %v600
    %v832 = vunpack.c.l.b16 %v601
    %v833 = vunpack.c.h.b16 %v601
    %v834 = vunpack.c.l.b16 %v602
    %v835 = vunpack.c.h.b16 %v602
    %v836 = vunpack.c.l.b16 %v603
    %v837 = vunpack.c.h.b16 %v603
    %v838 = vpack.c.b16 %v712, %v710
    %v839 = vpack.c.b16 %v713, %v711
    %v840 = vpack.c.b16 %v716, %v714
    %v841 = vpack.c.b16 %v717, %v715
    %v842 = vpack.c.b16 %v720, %v718
    %v843 = vpack.c.b16 %v721, %v719
    %v844 = vpack.c.b16 %v724, %v722
    %v845 = vpack.c.b16 %v725, %v723
    %v846 = vpack.c.b16 %v728, %v726
    %v847 = vpack.c.b16 %v729, %v727
    %v848 = vpack.c.b16 %v732, %v730
    %v849 = vpack.c.b16 %v733, %v731
    %v850 = vpack.c.b16 %v736, %v734
    %v851 = vpack.c.b16 %v737, %v735
    %v852 = vpack.c.b16 %v740, %v738
    %v853 = vpack.c.b16 %v741, %v739
    %v854 = vpack.c.b16 %v744, %v742
    %v855 = vpack.c.b16 %v745, %v743
    %v856 = vpack.c.b16 %v748, %v746
    %v857 = vpack.c.b16 %v749, %v747
    %v858 = vpack.c.b16 %v752, %v750
    %v859 = vpack.c.b16 %v753, %v751
    %v860 = vpack.c.b16 %v756, %v754
    %v861 = vpack.c.b16 %v757, %v755
    %v862 = vpack.c.b16 %v760, %v758
    %v863 = vpack.c.b16 %v761, %v759
    %v864 = vpack.c.b16 %v764, %v762
    %v865 = vpack.c.b16 %v765, %v763
    %v866 = vpack.c.b16 %v768, %v766
    %v867 = vpack.c.b16 %v769, %v767
    %v868 = vpack.c.b16 %v772, %v770
    %v869 = vpack.c.b16 %v773, %v771
    %v870 = vpack.c.b16 %v776, %v774
    %v871 = vpack.c.b16 %v777, %v775
    %v872 = vpack.c.b16 %v780, %v778
    %v873 = vpack.c.b16 %v781, %v779
    %v874 = vpack.c.b16 %v784, %v782
    %v875 = vpack.c.b16 %v785, %v783
    %v876 = vpack.c.b16 %v788, %v786
    %v877 = vpack.c.b16 %v789, %v787
    %v878 = vpack.c.b16 %v792, %v790
    %v879 = vpack.c.b16 %v793, %v791
    %v880 = vpack.c.b16 %v796, %v794
    %v881 = vpack.c.b16 %v797, %v795
    %v882 = vpack.c.b16 %v800, %v798
    %v883 = vpack.c.b16 %v801, %v799
    %v884 = vpack.c.b16 %v804, %v802
    %v885 = vpack.c.b16 %v805, %v803
    %v886 = vpack.c.b16 %v808, %v806
    %v887 = vpack.c.b16 %v809, %v807
    %v888 = vpack.c.b16 %v812, %v810
    %v889 = vpack.c.b16 %v813, %v811
    %v890 = vpack.c.b16 %v816, %v814
    %v891 = vpack.c.b16 %v817, %v815
    %v892 = vpack.c.b16 %v820, %v818
    %v893 = vpack.c.b16 %v821, %v819
    %v894 = vpack.c.b16 %v824, %v822
    %v895 = vpack.c.b16 %v825, %v823
    %v896 = vpack.c.b16 %v828, %v826
    %v897 = vpack.c.b16 %v829, %v827
    %v898 = vpack.c.b16 %v832, %v830
    %v899 = vpack.c.b16 %v833, %v831
    %v900 = vpack.c.b16 %v836, %v834
    %v901 = vpack.c.b16 %v837, %v835
    %966 = vmatprep.subr.bf16.mxu0 %v839
    %967 = vmatpush1.bf16.msra.mxu0 %v838
    %968 = vmatprep.subr.bf16.mxu0 %v841
    %969 = vmatpush1.bf16.msra.mxu0 %v840
    %970 = vmatprep.subr.bf16.mxu0 %v843
    %971 = vmatpush1.bf16.msra.mxu0 %v842
    %972 = vmatprep.subr.bf16.mxu0 %v845
    %973 = vmatpush1.bf16.msra.mxu0 %v844
    %974 = vmatprep.subr.bf16.mxu0 %v847
    %975 = vmatpush1.bf16.msra.mxu0 %v846
    %976 = vmatprep.subr.bf16.mxu0 %v849
    %977 = vmatpush1.bf16.msra.mxu0 %v848
    %978 = vmatprep.subr.bf16.mxu0 %v851
    %979 = vmatpush1.bf16.msra.mxu0 %v850
    %980 = vmatprep.subr.bf16.mxu0 %v853
    %981 = vmatpush1.bf16.msra.mxu0 %v852
    %982 = vmatprep.subr.bf16.mxu0 %v855
    %983 = vmatpush1.bf16.msra.mxu0 %v854
    %984 = vmatprep.subr.bf16.mxu0 %v857
    %985 = vmatpush1.bf16.msra.mxu0 %v856
    %986 = vmatprep.subr.bf16.mxu0 %v859
    %987 = vmatpush1.bf16.msra.mxu0 %v858
    %988 = vmatprep.subr.bf16.mxu0 %v861
    %989 = vmatpush1.bf16.msra.mxu0 %v860
    %990 = vmatprep.subr.bf16.mxu0 %v863
    %991 = vmatpush1.bf16.msra.mxu0 %v862
    %992 = vmatprep.subr.bf16.mxu0 %v865
    %993 = vmatpush1.bf16.msra.mxu0 %v864
    %994 = vmatprep.subr.bf16.mxu0 %v867
    %995 = vmatpush1.bf16.msra.mxu0 %v866
    %996 = vmatprep.subr.bf16.mxu0 %v869
    %997 = vmatpush1.bf16.msra.mxu0 %v868
    %998 = vmatprep.mubr.bf16.mxu0 %v639
    %999 = vmatmul.mubr.bf16.gmra.mrb[0].mxu0 %v632
    %v1000 = vpop.f32.mrb[0].mxu0
    %v1001 = vadd.f32 %v610, %v1000
    %v1002 = vpop.f32.mrb[0].mxu0
    %v1003 = vadd.f32 %v614, %v1002
    %v1004 = vpop.f32.mrb[0].mxu0
    %v1005 = vpop.f32.mrb[0].mxu0
    %1006 = vdwg.mxu0
    %1007 = vmatprep.subr.bf16.mxu0 %v871
    %1008 = vmatpush1.bf16.msra.mxu0 %v870
    %1009 = vmatprep.subr.bf16.mxu0 %v873
    %1010 = vmatpush1.bf16.msra.mxu0 %v872
    %1011 = vmatprep.subr.bf16.mxu0 %v875
    %1012 = vmatpush1.bf16.msra.mxu0 %v874
    %1013 = vmatprep.subr.bf16.mxu0 %v877
    %1014 = vmatpush1.bf16.msra.mxu0 %v876
    %1015 = vmatprep.subr.bf16.mxu0 %v879
    %1016 = vmatpush1.bf16.msra.mxu0 %v878
    %1017 = vmatprep.subr.bf16.mxu0 %v881
    %1018 = vmatpush1.bf16.msra.mxu0 %v880
    %1019 = vmatprep.subr.bf16.mxu0 %v883
    %1020 = vmatpush1.bf16.msra.mxu0 %v882
    %1021 = vmatprep.subr.bf16.mxu0 %v885
    %1022 = vmatpush1.bf16.msra.mxu0 %v884
    %1023 = vmatprep.subr.bf16.mxu0 %v887
    %1024 = vmatpush1.bf16.msra.mxu0 %v886
    %1025 = vmatprep.subr.bf16.mxu0 %v889
    %1026 = vmatpush1.bf16.msra.mxu0 %v888
    %1027 = vmatprep.subr.bf16.mxu0 %v891
    %1028 = vmatpush1.bf16.msra.mxu0 %v890
    %1029 = vmatprep.subr.bf16.mxu0 %v893
    %1030 = vmatpush1.bf16.msra.mxu0 %v892
    %1031 = vmatprep.subr.bf16.mxu0 %v895
    %1032 = vmatpush1.bf16.msra.mxu0 %v894
    %1033 = vmatprep.subr.bf16.mxu0 %v897
    %1034 = vmatpush1.bf16.msra.mxu0 %v896
    %1035 = vmatprep.subr.bf16.mxu0 %v899
    %1036 = vmatpush1.bf16.msra.mxu0 %v898
    %1037 = vmatprep.subr.bf16.mxu0 %v901
    %1038 = vmatpush1.bf16.msra.mxu0 %v900
    %1039 = vmatprep.mubr.bf16.mxu0 %v641
    %1040 = vmatmul.mubr.bf16.gmra.mrb[0].mxu0 %v640
    %v1041 = vpop.f32.mrb[0].mxu0
    %v1042 = vadd.f32 %v1001, %v1041
    %v1043 = vpop.f32.mrb[0].mxu0
    %v1044 = vadd.f32 %v1003, %v1043
    %v1045 = vpop.f32.mrb[0].mxu0
    %v1046 = vpop.f32.mrb[0].mxu0
    %1047 = vdwg.mxu0
    %v1048 = vmax.f32 %v1042, 0.0
    %v1049 = vmax.f32 %v1044, 0.0
    %v1052 = vcombine.low %v1048, %v1049
    %v1054 = vunpack.c.l.s4 1983009808
    %v1055 = vunpack.c.0.s8 %v1054
    %v1056 = vlaneseq
    %v1057 = vshrl.u32 %v1056, 7
    %v1058 = vsub.s32 %v1055, %v1057
    %v1059 = vrot.slane %v1052, %v1058
    %1061 = vst [vmem:[#allocation2 + $0x4] sm:$0xf] %v1059
    %s1062 = scalar_lea.vmem %s0, 8
    %v1063 = vld [vmem:[%s1062] sm:$0xf]
    %s1064 = scalar_lea.vmem %s1, 1024
    %v1065 = vld [vmem:[%s1064] sm:$0xff]
    %v1066 = vld [vmem:[%s1064 + $0x8] sm:$0xff]
    %v1067 = vld [vmem:[%s1064 + $0x10] sm:$0xff]
    %v1068 = vld [vmem:[%s1064 + $0x18] sm:$0xff]
    %v1069 = vld [vmem:[%s1064 + $0x20] sm:$0xff]
    %v1070 = vld [vmem:[%s1064 + $0x28] sm:$0xff]
    %v1071 = vld [vmem:[%s1064 + $0x30] sm:$0xff]
    %v1072 = vld [vmem:[%s1064 + $0x38] sm:$0xff]
    %v1073 = vld [vmem:[%s1064 + $0x40] sm:$0xff]
    %v1074 = vld [vmem:[%s1064 + $0x48] sm:$0xff]
    %v1075 = vld [vmem:[%s1064 + $0x50] sm:$0xff]
    %v1076 = vld [vmem:[%s1064 + $0x58] sm:$0xff]
    %v1077 = vld [vmem:[%s1064 + $0x60] sm:$0xff]
    %v1078 = vld [vmem:[%s1064 + $0x68] sm:$0xff]
    %v1079 = vld [vmem:[%s1064 + $0x70] sm:$0xff]
    %v1080 = vld [vmem:[%s1064 + $0x78] sm:$0xff]
    %v1081 = vld [vmem:[%s1064 + $0x80] sm:$0xff]
    %v1082 = vld [vmem:[%s1064 + $0x88] sm:$0xff]
    %v1083 = vld [vmem:[%s1064 + $0x90] sm:$0xff]
    %v1084 = vld [vmem:[%s1064 + $0x98] sm:$0xff]
    %v1085 = vld [vmem:[%s1064 + $0xa0] sm:$0xff]
    %v1086 = vld [vmem:[%s1064 + $0xa8] sm:$0xff]
    %v1087 = vld [vmem:[%s1064 + $0xb0] sm:$0xff]
    %v1088 = vld [vmem:[%s1064 + $0xb8] sm:$0xff]
    %v1089 = vld [vmem:[%s1064 + $0xc0] sm:$0xff]
    %v1090 = vld [vmem:[%s1064 + $0xc8] sm:$0xff]
    %v1091 = vld [vmem:[%s1064 + $0xd0] sm:$0xff]
    %v1092 = vld [vmem:[%s1064 + $0xd8] sm:$0xff]
    %v1093 = vld [vmem:[%s1064 + $0xe0] sm:$0xff]
    %v1094 = vld [vmem:[%s1064 + $0xe8] sm:$0xff]
    %v1095 = vld [vmem:[%s1064 + $0xf0] sm:$0xff]
    %v1096 = vld [vmem:[%s1064 + $0xf8] sm:$0xff]
    %v1097 = vld [vmem:[%s1064 + $0x100] sm:$0xff]
    %v1098 = vld [vmem:[%s1064 + $0x108] sm:$0xff]
    %v1099 = vld [vmem:[%s1064 + $0x110] sm:$0xff]
    %v1100 = vld [vmem:[%s1064 + $0x118] sm:$0xff]
    %v1101 = vld [vmem:[%s1064 + $0x120] sm:$0xff]
    %v1102 = vld [vmem:[%s1064 + $0x128] sm:$0xff]
    %v1103 = vld [vmem:[%s1064 + $0x130] sm:$0xff]
    %v1104 = vld [vmem:[%s1064 + $0x138] sm:$0xff]
    %v1105 = vld [vmem:[%s1064 + $0x140] sm:$0xff]
    %v1106 = vld [vmem:[%s1064 + $0x148] sm:$0xff]
    %v1107 = vld [vmem:[%s1064 + $0x150] sm:$0xff]
    %v1108 = vld [vmem:[%s1064 + $0x158] sm:$0xff]
    %v1109 = vld [vmem:[%s1064 + $0x160] sm:$0xff]
    %v1110 = vld [vmem:[%s1064 + $0x168] sm:$0xff]
    %v1111 = vld [vmem:[%s1064 + $0x170] sm:$0xff]
    %v1112 = vld [vmem:[%s1064 + $0x178] sm:$0xff]
    %v1113 = vld [vmem:[%s1064 + $0x180] sm:$0xff]
    %v1114 = vld [vmem:[%s1064 + $0x188] sm:$0xff]
    %v1115 = vld [vmem:[%s1064 + $0x190] sm:$0xff]
    %v1116 = vld [vmem:[%s1064 + $0x198] sm:$0xff]
    %v1117 = vld [vmem:[%s1064 + $0x1a0] sm:$0xff]
    %v1118 = vld [vmem:[%s1064 + $0x1a8] sm:$0xff]
    %v1119 = vld [vmem:[%s1064 + $0x1b0] sm:$0xff]
    %v1120 = vld [vmem:[%s1064 + $0x1b8] sm:$0xff]
    %v1121 = vld [vmem:[%s1064 + $0x1c0] sm:$0xff]
    %v1122 = vld [vmem:[%s1064 + $0x1c8] sm:$0xff]
    %v1123 = vld [vmem:[%s1064 + $0x1d0] sm:$0xff]
    %v1124 = vld [vmem:[%s1064 + $0x1d8] sm:$0xff]
    %v1125 = vld [vmem:[%s1064 + $0x1e0] sm:$0xff]
    %v1126 = vld [vmem:[%s1064 + $0x1e8] sm:$0xff]
    %v1127 = vld [vmem:[%s1064 + $0x1f0] sm:$0xff]
    %v1128 = vld [vmem:[%s1064 + $0x1f8] sm:$0xff]
    %s1129 = scalar_lea.vmem %s2, 4
    %v1130 = vld [vmem:[%s1129] sm:$0x3]
    %v1132 = vlaneseq
    %v1133 = vshrl.u32 %v1132, 7
    %v1134 = vsub.s32 0, %v1133
    %v1135 = vrot.slane %v1130, %v1134
    %v1136 = vlaneseq
    %v1137 = vshrl.u32 %v1136, 7
    %v1138 = vsub.s32 1, %v1137
    %v1139 = vrot.slane %v1130, %v1138
    %v1144 = vunpack.c.l.s4 1966171168
    %v1145 = vunpack.c.0.s8 %v1144
    %v1146 = vlaneseq
    %v1147 = vshrl.u32 %v1146, 7
    %v1148 = vsub.s32 %v1145, %v1147
    %v1149 = vrot.slane %v1063, %v1148
    %v1150 = vcombine.high %v1149, %v1149
    %v1152 = vunpack.c.l.s4 1966171168
    %v1153 = vunpack.c.0.s8 %v1152
    %v1154 = vlaneseq
    %v1155 = vshrl.u32 %v1154, 7
    %v1156 = vsub.s32 %v1153, %v1155
    %v1157 = vrot.slane %v1149, %v1156
    %v1159 = vunpack.c.l.s4 1966171168
    %v1160 = vunpack.c.0.s8 %v1159
    %v1161 = vlaneseq
    %v1162 = vshrl.u32 %v1161, 7
    %v1163 = vsub.s32 %v1160, %v1162
    %v1164 = vrot.slane %v1150, %v1163
    %v1165 = vcombine.high %v1157, %v1157
    %v1166 = vcombine.high %v1164, %v1164
    %v1235 = vunpack.c.l.b16 %v1065
    %v1236 = vunpack.c.h.b16 %v1065
    %v1237 = vunpack.c.l.b16 %v1066
    %v1238 = vunpack.c.h.b16 %v1066
    %v1239 = vunpack.c.l.b16 %v1067
    %v1240 = vunpack.c.h.b16 %v1067
    %v1241 = vunpack.c.l.b16 %v1068
    %v1242 = vunpack.c.h.b16 %v1068
    %v1243 = vunpack.c.l.b16 %v1069
    %v1244 = vunpack.c.h.b16 %v1069
    %v1245 = vunpack.c.l.b16 %v1070
    %v1246 = vunpack.c.h.b16 %v1070
    %v1247 = vunpack.c.l.b16 %v1071
    %v1248 = vunpack.c.h.b16 %v1071
    %v1249 = vunpack.c.l.b16 %v1072
    %v1250 = vunpack.c.h.b16 %v1072
    %v1251 = vunpack.c.l.b16 %v1073
    %v1252 = vunpack.c.h.b16 %v1073
    %v1253 = vunpack.c.l.b16 %v1074
    %v1254 = vunpack.c.h.b16 %v1074
    %v1255 = vunpack.c.l.b16 %v1075
    %v1256 = vunpack.c.h.b16 %v1075
    %v1257 = vunpack.c.l.b16 %v1076
    %v1258 = vunpack.c.h.b16 %v1076
    %v1259 = vunpack.c.l.b16 %v1077
    %v1260 = vunpack.c.h.b16 %v1077
    %v1261 = vunpack.c.l.b16 %v1078
    %v1262 = vunpack.c.h.b16 %v1078
    %v1263 = vunpack.c.l.b16 %v1079
    %v1264 = vunpack.c.h.b16 %v1079
    %v1265 = vunpack.c.l.b16 %v1080
    %v1266 = vunpack.c.h.b16 %v1080
    %v1267 = vunpack.c.l.b16 %v1081
    %v1268 = vunpack.c.h.b16 %v1081
    %v1269 = vunpack.c.l.b16 %v1082
    %v1270 = vunpack.c.h.b16 %v1082
    %v1271 = vunpack.c.l.b16 %v1083
    %v1272 = vunpack.c.h.b16 %v1083
    %v1273 = vunpack.c.l.b16 %v1084
    %v1274 = vunpack.c.h.b16 %v1084
    %v1275 = vunpack.c.l.b16 %v1085
    %v1276 = vunpack.c.h.b16 %v1085
    %v1277 = vunpack.c.l.b16 %v1086
    %v1278 = vunpack.c.h.b16 %v1086
    %v1279 = vunpack.c.l.b16 %v1087
    %v1280 = vunpack.c.h.b16 %v1087
    %v1281 = vunpack.c.l.b16 %v1088
    %v1282 = vunpack.c.h.b16 %v1088
    %v1283 = vunpack.c.l.b16 %v1089
    %v1284 = vunpack.c.h.b16 %v1089
    %v1285 = vunpack.c.l.b16 %v1090
    %v1286 = vunpack.c.h.b16 %v1090
    %v1287 = vunpack.c.l.b16 %v1091
    %v1288 = vunpack.c.h.b16 %v1091
    %v1289 = vunpack.c.l.b16 %v1092
    %v1290 = vunpack.c.h.b16 %v1092
    %v1291 = vunpack.c.l.b16 %v1093
    %v1292 = vunpack.c.h.b16 %v1093
    %v1293 = vunpack.c.l.b16 %v1094
    %v1294 = vunpack.c.h.b16 %v1094
    %v1295 = vunpack.c.l.b16 %v1095
    %v1296 = vunpack.c.h.b16 %v1095
    %v1297 = vunpack.c.l.b16 %v1096
    %v1298 = vunpack.c.h.b16 %v1096
    %v1299 = vunpack.c.l.b16 %v1097
    %v1300 = vunpack.c.h.b16 %v1097
    %v1301 = vunpack.c.l.b16 %v1098
    %v1302 = vunpack.c.h.b16 %v1098
    %v1303 = vunpack.c.l.b16 %v1099
    %v1304 = vunpack.c.h.b16 %v1099
    %v1305 = vunpack.c.l.b16 %v1100
    %v1306 = vunpack.c.h.b16 %v1100
    %v1307 = vunpack.c.l.b16 %v1101
    %v1308 = vunpack.c.h.b16 %v1101
    %v1309 = vunpack.c.l.b16 %v1102
    %v1310 = vunpack.c.h.b16 %v1102
    %v1311 = vunpack.c.l.b16 %v1103
    %v1312 = vunpack.c.h.b16 %v1103
    %v1313 = vunpack.c.l.b16 %v1104
    %v1314 = vunpack.c.h.b16 %v1104
    %v1315 = vunpack.c.l.b16 %v1105
    %v1316 = vunpack.c.h.b16 %v1105
    %v1317 = vunpack.c.l.b16 %v1106
    %v1318 = vunpack.c.h.b16 %v1106
    %v1319 = vunpack.c.l.b16 %v1107
    %v1320 = vunpack.c.h.b16 %v1107
    %v1321 = vunpack.c.l.b16 %v1108
    %v1322 = vunpack.c.h.b16 %v1108
    %v1323 = vunpack.c.l.b16 %v1109
    %v1324 = vunpack.c.h.b16 %v1109
    %v1325 = vunpack.c.l.b16 %v1110
    %v1326 = vunpack.c.h.b16 %v1110
    %v1327 = vunpack.c.l.b16 %v1111
    %v1328 = vunpack.c.h.b16 %v1111
    %v1329 = vunpack.c.l.b16 %v1112
    %v1330 = vunpack.c.h.b16 %v1112
    %v1331 = vunpack.c.l.b16 %v1113
    %v1332 = vunpack.c.h.b16 %v1113
    %v1333 = vunpack.c.l.b16 %v1114
    %v1334 = vunpack.c.h.b16 %v1114
    %v1335 = vunpack.c.l.b16 %v1115
    %v1336 = vunpack.c.h.b16 %v1115
    %v1337 = vunpack.c.l.b16 %v1116
    %v1338 = vunpack.c.h.b16 %v1116
    %v1339 = vunpack.c.l.b16 %v1117
    %v1340 = vunpack.c.h.b16 %v1117
    %v1341 = vunpack.c.l.b16 %v1118
    %v1342 = vunpack.c.h.b16 %v1118
    %v1343 = vunpack.c.l.b16 %v1119
    %v1344 = vunpack.c.h.b16 %v1119
    %v1345 = vunpack.c.l.b16 %v1120
    %v1346 = vunpack.c.h.b16 %v1120
    %v1347 = vunpack.c.l.b16 %v1121
    %v1348 = vunpack.c.h.b16 %v1121
    %v1349 = vunpack.c.l.b16 %v1122
    %v1350 = vunpack.c.h.b16 %v1122
    %v1351 = vunpack.c.l.b16 %v1123
    %v1352 = vunpack.c.h.b16 %v1123
    %v1353 = vunpack.c.l.b16 %v1124
    %v1354 = vunpack.c.h.b16 %v1124
    %v1355 = vunpack.c.l.b16 %v1125
    %v1356 = vunpack.c.h.b16 %v1125
    %v1357 = vunpack.c.l.b16 %v1126
    %v1358 = vunpack.c.h.b16 %v1126
    %v1359 = vunpack.c.l.b16 %v1127
    %v1360 = vunpack.c.h.b16 %v1127
    %v1361 = vunpack.c.l.b16 %v1128
    %v1362 = vunpack.c.h.b16 %v1128
    %v1363 = vpack.c.b16 %v1237, %v1235
    %v1364 = vpack.c.b16 %v1238, %v1236
    %v1365 = vpack.c.b16 %v1241, %v1239
    %v1366 = vpack.c.b16 %v1242, %v1240
    %v1367 = vpack.c.b16 %v1245, %v1243
    %v1368 = vpack.c.b16 %v1246, %v1244
    %v1369 = vpack.c.b16 %v1249, %v1247
    %v1370 = vpack.c.b16 %v1250, %v1248
    %v1371 = vpack.c.b16 %v1253, %v1251
    %v1372 = vpack.c.b16 %v1254, %v1252
    %v1373 = vpack.c.b16 %v1257, %v1255
    %v1374 = vpack.c.b16 %v1258, %v1256
    %v1375 = vpack.c.b16 %v1261, %v1259
    %v1376 = vpack.c.b16 %v1262, %v1260
    %v1377 = vpack.c.b16 %v1265, %v1263
    %v1378 = vpack.c.b16 %v1266, %v1264
    %v1379 = vpack.c.b16 %v1269, %v1267
    %v1380 = vpack.c.b16 %v1270, %v1268
    %v1381 = vpack.c.b16 %v1273, %v1271
    %v1382 = vpack.c.b16 %v1274, %v1272
    %v1383 = vpack.c.b16 %v1277, %v1275
    %v1384 = vpack.c.b16 %v1278, %v1276
    %v1385 = vpack.c.b16 %v1281, %v1279
    %v1386 = vpack.c.b16 %v1282, %v1280
    %v1387 = vpack.c.b16 %v1285, %v1283
    %v1388 = vpack.c.b16 %v1286, %v1284
    %v1389 = vpack.c.b16 %v1289, %v1287
    %v1390 = vpack.c.b16 %v1290, %v1288
    %v1391 = vpack.c.b16 %v1293, %v1291
    %v1392 = vpack.c.b16 %v1294, %v1292
    %v1393 = vpack.c.b16 %v1297, %v1295
    %v1394 = vpack.c.b16 %v1298, %v1296
    %v1395 = vpack.c.b16 %v1301, %v1299
    %v1396 = vpack.c.b16 %v1302, %v1300
    %v1397 = vpack.c.b16 %v1305, %v1303
    %v1398 = vpack.c.b16 %v1306, %v1304
    %v1399 = vpack.c.b16 %v1309, %v1307
    %v1400 = vpack.c.b16 %v1310, %v1308
    %v1401 = vpack.c.b16 %v1313, %v1311
    %v1402 = vpack.c.b16 %v1314, %v1312
    %v1403 = vpack.c.b16 %v1317, %v1315
    %v1404 = vpack.c.b16 %v1318, %v1316
    %v1405 = vpack.c.b16 %v1321, %v1319
    %v1406 = vpack.c.b16 %v1322, %v1320
    %v1407 = vpack.c.b16 %v1325, %v1323
    %v1408 = vpack.c.b16 %v1326, %v1324
    %v1409 = vpack.c.b16 %v1329, %v1327
    %v1410 = vpack.c.b16 %v1330, %v1328
    %v1411 = vpack.c.b16 %v1333, %v1331
    %v1412 = vpack.c.b16 %v1334, %v1332
    %v1413 = vpack.c.b16 %v1337, %v1335
    %v1414 = vpack.c.b16 %v1338, %v1336
    %v1415 = vpack.c.b16 %v1341, %v1339
    %v1416 = vpack.c.b16 %v1342, %v1340
    %v1417 = vpack.c.b16 %v1345, %v1343
    %v1418 = vpack.c.b16 %v1346, %v1344
    %v1419 = vpack.c.b16 %v1349, %v1347
    %v1420 = vpack.c.b16 %v1350, %v1348
    %v1421 = vpack.c.b16 %v1353, %v1351
    %v1422 = vpack.c.b16 %v1354, %v1352
    %v1423 = vpack.c.b16 %v1357, %v1355
    %v1424 = vpack.c.b16 %v1358, %v1356
    %v1425 = vpack.c.b16 %v1361, %v1359
    %v1426 = vpack.c.b16 %v1362, %v1360
    %1491 = vmatprep.subr.bf16.mxu0 %v1364
    %1492 = vmatpush1.bf16.msra.mxu0 %v1363
    %1493 = vmatprep.subr.bf16.mxu0 %v1366
    %1494 = vmatpush1.bf16.msra.mxu0 %v1365
    %1495 = vmatprep.subr.bf16.mxu0 %v1368
    %1496 = vmatpush1.bf16.msra.mxu0 %v1367
    %1497 = vmatprep.subr.bf16.mxu0 %v1370
    %1498 = vmatpush1.bf16.msra.mxu0 %v1369
    %1499 = vmatprep.subr.bf16.mxu0 %v1372
    %1500 = vmatpush1.bf16.msra.mxu0 %v1371
    %1501 = vmatprep.subr.bf16.mxu0 %v1374
    %1502 = vmatpush1.bf16.msra.mxu0 %v1373
    %1503 = vmatprep.subr.bf16.mxu0 %v1376
    %1504 = vmatpush1.bf16.msra.mxu0 %v1375
    %1505 = vmatprep.subr.bf16.mxu0 %v1378
    %1506 = vmatpush1.bf16.msra.mxu0 %v1377
    %1507 = vmatprep.subr.bf16.mxu0 %v1380
    %1508 = vmatpush1.bf16.msra.mxu0 %v1379
    %1509 = vmatprep.subr.bf16.mxu0 %v1382
    %1510 = vmatpush1.bf16.msra.mxu0 %v1381
    %1511 = vmatprep.subr.bf16.mxu0 %v1384
    %1512 = vmatpush1.bf16.msra.mxu0 %v1383
    %1513 = vmatprep.subr.bf16.mxu0 %v1386
    %1514 = vmatpush1.bf16.msra.mxu0 %v1385
    %1515 = vmatprep.subr.bf16.mxu0 %v1388
    %1516 = vmatpush1.bf16.msra.mxu0 %v1387
    %1517 = vmatprep.subr.bf16.mxu0 %v1390
    %1518 = vmatpush1.bf16.msra.mxu0 %v1389
    %1519 = vmatprep.subr.bf16.mxu0 %v1392
    %1520 = vmatpush1.bf16.msra.mxu0 %v1391
    %1521 = vmatprep.subr.bf16.mxu0 %v1394
    %1522 = vmatpush1.bf16.msra.mxu0 %v1393
    %1523 = vmatprep.mubr.bf16.mxu0 %v1164
    %1524 = vmatmul.mubr.bf16.gmra.mrb[0].mxu0 %v1157
    %v1525 = vpop.f32.mrb[0].mxu0
    %v1526 = vadd.f32 %v1135, %v1525
    %v1527 = vpop.f32.mrb[0].mxu0
    %v1528 = vadd.f32 %v1139, %v1527
    %v1529 = vpop.f32.mrb[0].mxu0
    %v1530 = vpop.f32.mrb[0].mxu0
    %1531 = vdwg.mxu0
    %1532 = vmatprep.subr.bf16.mxu0 %v1396
    %1533 = vmatpush1.bf16.msra.mxu0 %v1395
    %1534 = vmatprep.subr.bf16.mxu0 %v1398
    %1535 = vmatpush1.bf16.msra.mxu0 %v1397
    %1536 = vmatprep.subr.bf16.mxu0 %v1400
    %1537 = vmatpush1.bf16.msra.mxu0 %v1399
    %1538 = vmatprep.subr.bf16.mxu0 %v1402
    %1539 = vmatpush1.bf16.msra.mxu0 %v1401
    %1540 = vmatprep.subr.bf16.mxu0 %v1404
    %1541 = vmatpush1.bf16.msra.mxu0 %v1403
    %1542 = vmatprep.subr.bf16.mxu0 %v1406
    %1543 = vmatpush1.bf16.msra.mxu0 %v1405
    %1544 = vmatprep.subr.bf16.mxu0 %v1408
    %1545 = vmatpush1.bf16.msra.mxu0 %v1407
    %1546 = vmatprep.subr.bf16.mxu0 %v1410
    %1547 = vmatpush1.bf16.msra.mxu0 %v1409
    %1548 = vmatprep.subr.bf16.mxu0 %v1412
    %1549 = vmatpush1.bf16.msra.mxu0 %v1411
    %1550 = vmatprep.subr.bf16.mxu0 %v1414
    %1551 = vmatpush1.bf16.msra.mxu0 %v1413
    %1552 = vmatprep.subr.bf16.mxu0 %v1416
    %1553 = vmatpush1.bf16.msra.mxu0 %v1415
    %1554 = vmatprep.subr.bf16.mxu0 %v1418
    %1555 = vmatpush1.bf16.msra.mxu0 %v1417
    %1556 = vmatprep.subr.bf16.mxu0 %v1420
    %1557 = vmatpush1.bf16.msra.mxu0 %v1419
    %1558 = vmatprep.subr.bf16.mxu0 %v1422
    %1559 = vmatpush1.bf16.msra.mxu0 %v1421
    %1560 = vmatprep.subr.bf16.mxu0 %v1424
    %1561 = vmatpush1.bf16.msra.mxu0 %v1423
    %1562 = vmatprep.subr.bf16.mxu0 %v1426
    %1563 = vmatpush1.bf16.msra.mxu0 %v1425
    %1564 = vmatprep.mubr.bf16.mxu0 %v1166
    %1565 = vmatmul.mubr.bf16.gmra.mrb[0].mxu0 %v1165
    %v1566 = vpop.f32.mrb[0].mxu0
    %v1567 = vadd.f32 %v1526, %v1566
    %v1568 = vpop.f32.mrb[0].mxu0
    %v1569 = vadd.f32 %v1528, %v1568
    %v1570 = vpop.f32.mrb[0].mxu0
    %v1571 = vpop.f32.mrb[0].mxu0
    %1572 = vdwg.mxu0
    %v1573 = vmax.f32 %v1567, 0.0
    %v1574 = vmax.f32 %v1569, 0.0
    %v1577 = vcombine.low %v1573, %v1574
    %v1579 = vunpack.c.l.s4 1983009808
    %v1580 = vunpack.c.0.s8 %v1579
    %v1581 = vlaneseq
    %v1582 = vshrl.u32 %v1581, 7
    %v1583 = vsub.s32 %v1580, %v1582
    %v1584 = vrot.slane %v1577, %v1583
    %1586 = vst [vmem:[#allocation2 + $0x8] sm:$0xf] %v1584
    %s1587 = scalar_lea.vmem %s0, 12
    %v1588 = vld [vmem:[%s1587] sm:$0xf]
    %s1589 = scalar_lea.vmem %s1, 1536
    %v1590 = vld [vmem:[%s1589] sm:$0xff]
    %v1591 = vld [vmem:[%s1589 + $0x8] sm:$0xff]
    %v1592 = vld [vmem:[%s1589 + $0x10] sm:$0xff]
    %v1593 = vld [vmem:[%s1589 + $0x18] sm:$0xff]
    %v1594 = vld [vmem:[%s1589 + $0x20] sm:$0xff]
    %v1595 = vld [vmem:[%s1589 + $0x28] sm:$0xff]
    %v1596 = vld [vmem:[%s1589 + $0x30] sm:$0xff]
    %v1597 = vld [vmem:[%s1589 + $0x38] sm:$0xff]
    %v1598 = vld [vmem:[%s1589 + $0x40] sm:$0xff]
    %v1599 = vld [vmem:[%s1589 + $0x48] sm:$0xff]
    %v1600 = vld [vmem:[%s1589 + $0x50] sm:$0xff]
    %v1601 = vld [vmem:[%s1589 + $0x58] sm:$0xff]
    %v1602 = vld [vmem:[%s1589 + $0x60] sm:$0xff]
    %v1603 = vld [vmem:[%s1589 + $0x68] sm:$0xff]
    %v1604 = vld [vmem:[%s1589 + $0x70] sm:$0xff]
    %v1605 = vld [vmem:[%s1589 + $0x78] sm:$0xff]
    %v1606 = vld [vmem:[%s1589 + $0x80] sm:$0xff]
    %v1607 = vld [vmem:[%s1589 + $0x88] sm:$0xff]
    %v1608 = vld [vmem:[%s1589 + $0x90] sm:$0xff]
    %v1609 = vld [vmem:[%s1589 + $0x98] sm:$0xff]
    %v1610 = vld [vmem:[%s1589 + $0xa0] sm:$0xff]
    %v1611 = vld [vmem:[%s1589 + $0xa8] sm:$0xff]
    %v1612 = vld [vmem:[%s1589 + $0xb0] sm:$0xff]
    %v1613 = vld [vmem:[%s1589 + $0xb8] sm:$0xff]
    %v1614 = vld [vmem:[%s1589 + $0xc0] sm:$0xff]
    %v1615 = vld [vmem:[%s1589 + $0xc8] sm:$0xff]
    %v1616 = vld [vmem:[%s1589 + $0xd0] sm:$0xff]
    %v1617 = vld [vmem:[%s1589 + $0xd8] sm:$0xff]
    %v1618 = vld [vmem:[%s1589 + $0xe0] sm:$0xff]
    %v1619 = vld [vmem:[%s1589 + $0xe8] sm:$0xff]
    %v1620 = vld [vmem:[%s1589 + $0xf0] sm:$0xff]
    %v1621 = vld [vmem:[%s1589 + $0xf8] sm:$0xff]
    %v1622 = vld [vmem:[%s1589 + $0x100] sm:$0xff]
    %v1623 = vld [vmem:[%s1589 + $0x108] sm:$0xff]
    %v1624 = vld [vmem:[%s1589 + $0x110] sm:$0xff]
    %v1625 = vld [vmem:[%s1589 + $0x118] sm:$0xff]
    %v1626 = vld [vmem:[%s1589 + $0x120] sm:$0xff]
    %v1627 = vld [vmem:[%s1589 + $0x128] sm:$0xff]
    %v1628 = vld [vmem:[%s1589 + $0x130] sm:$0xff]
    %v1629 = vld [vmem:[%s1589 + $0x138] sm:$0xff]
    %v1630 = vld [vmem:[%s1589 + $0x140] sm:$0xff]
    %v1631 = vld [vmem:[%s1589 + $0x148] sm:$0xff]
    %v1632 = vld [vmem:[%s1589 + $0x150] sm:$0xff]
    %v1633 = vld [vmem:[%s1589 + $0x158] sm:$0xff]
    %v1634 = vld [vmem:[%s1589 + $0x160] sm:$0xff]
    %v1635 = vld [vmem:[%s1589 + $0x168] sm:$0xff]
    %v1636 = vld [vmem:[%s1589 + $0x170] sm:$0xff]
    %v1637 = vld [vmem:[%s1589 + $0x178] sm:$0xff]
    %v1638 = vld [vmem:[%s1589 + $0x180] sm:$0xff]
    %v1639 = vld [vmem:[%s1589 + $0x188] sm:$0xff]
    %v1640 = vld [vmem:[%s1589 + $0x190] sm:$0xff]
    %v1641 = vld [vmem:[%s1589 + $0x198] sm:$0xff]
    %v1642 = vld [vmem:[%s1589 + $0x1a0] sm:$0xff]
    %v1643 = vld [vmem:[%s1589 + $0x1a8] sm:$0xff]
    %v1644 = vld [vmem:[%s1589 + $0x1b0] sm:$0xff]
    %v1645 = vld [vmem:[%s1589 + $0x1b8] sm:$0xff]
    %v1646 = vld [vmem:[%s1589 + $0x1c0] sm:$0xff]
    %v1647 = vld [vmem:[%s1589 + $0x1c8] sm:$0xff]
    %v1648 = vld [vmem:[%s1589 + $0x1d0] sm:$0xff]
    %v1649 = vld [vmem:[%s1589 + $0x1d8] sm:$0xff]
    %v1650 = vld [vmem:[%s1589 + $0x1e0] sm:$0xff]
    %v1651 = vld [vmem:[%s1589 + $0x1e8] sm:$0xff]
    %v1652 = vld [vmem:[%s1589 + $0x1f0] sm:$0xff]
    %v1653 = vld [vmem:[%s1589 + $0x1f8] sm:$0xff]
    %s1654 = scalar_lea.vmem %s2, 6
    %v1655 = vld [vmem:[%s1654] sm:$0x3]
    %v1657 = vlaneseq
    %v1658 = vshrl.u32 %v1657, 7
    %v1659 = vsub.s32 0, %v1658
    %v1660 = vrot.slane %v1655, %v1659
    %v1661 = vlaneseq
    %v1662 = vshrl.u32 %v1661, 7
    %v1663 = vsub.s32 1, %v1662
    %v1664 = vrot.slane %v1655, %v1663
    %v1669 = vunpack.c.l.s4 1966171168
    %v1670 = vunpack.c.0.s8 %v1669
    %v1671 = vlaneseq
    %v1672 = vshrl.u32 %v1671, 7
    %v1673 = vsub.s32 %v1670, %v1672
    %v1674 = vrot.slane %v1588, %v1673
    %v1675 = vcombine.high %v1674, %v1674
    %v1677 = vunpack.c.l.s4 1966171168
    %v1678 = vunpack.c.0.s8 %v1677
    %v1679 = vlaneseq
    %v1680 = vshrl.u32 %v1679, 7
    %v1681 = vsub.s32 %v1678, %v1680
    %v1682 = vrot.slane %v1674, %v1681
    %v1684 = vunpack.c.l.s4 1966171168
    %v1685 = vunpack.c.0.s8 %v1684
    %v1686 = vlaneseq
    %v1687 = vshrl.u32 %v1686, 7
    %v1688 = vsub.s32 %v1685, %v1687
    %v1689 = vrot.slane %v1675, %v1688
    %v1690 = vcombine.high %v1682, %v1682
    %v1691 = vcombine.high %v1689, %v1689
    %v1760 = vunpack.c.l.b16 %v1590
    %v1761 = vunpack.c.h.b16 %v1590
    %v1762 = vunpack.c.l.b16 %v1591
    %v1763 = vunpack.c.h.b16 %v1591
    %v1764 = vunpack.c.l.b16 %v1592
    %v1765 = vunpack.c.h.b16 %v1592
    %v1766 = vunpack.c.l.b16 %v1593
    %v1767 = vunpack.c.h.b16 %v1593
    %v1768 = vunpack.c.l.b16 %v1594
    %v1769 = vunpack.c.h.b16 %v1594
    %v1770 = vunpack.c.l.b16 %v1595
    %v1771 = vunpack.c.h.b16 %v1595
    %v1772 = vunpack.c.l.b16 %v1596
    %v1773 = vunpack.c.h.b16 %v1596
    %v1774 = vunpack.c.l.b16 %v1597
    %v1775 = vunpack.c.h.b16 %v1597
    %v1776 = vunpack.c.l.b16 %v1598
    %v1777 = vunpack.c.h.b16 %v1598
    %v1778 = vunpack.c.l.b16 %v1599
    %v1779 = vunpack.c.h.b16 %v1599
    %v1780 = vunpack.c.l.b16 %v1600
    %v1781 = vunpack.c.h.b16 %v1600
    %v1782 = vunpack.c.l.b16 %v1601
    %v1783 = vunpack.c.h.b16 %v1601
    %v1784 = vunpack.c.l.b16 %v1602
    %v1785 = vunpack.c.h.b16 %v1602
    %v1786 = vunpack.c.l.b16 %v1603
    %v1787 = vunpack.c.h.b16 %v1603
    %v1788 = vunpack.c.l.b16 %v1604
    %v1789 = vunpack.c.h.b16 %v1604
    %v1790 = vunpack.c.l.b16 %v1605
    %v1791 = vunpack.c.h.b16 %v1605
    %v1792 = vunpack.c.l.b16 %v1606
    %v1793 = vunpack.c.h.b16 %v1606
    %v1794 = vunpack.c.l.b16 %v1607
    %v1795 = vunpack.c.h.b16 %v1607
    %v1796 = vunpack.c.l.b16 %v1608
    %v1797 = vunpack.c.h.b16 %v1608
    %v1798 = vunpack.c.l.b16 %v1609
    %v1799 = vunpack.c.h.b16 %v1609
    %v1800 = vunpack.c.l.b16 %v1610
    %v1801 = vunpack.c.h.b16 %v1610
    %v1802 = vunpack.c.l.b16 %v1611
    %v1803 = vunpack.c.h.b16 %v1611
    %v1804 = vunpack.c.l.b16 %v1612
    %v1805 = vunpack.c.h.b16 %v1612
    %v1806 = vunpack.c.l.b16 %v1613
    %v1807 = vunpack.c.h.b16 %v1613
    %v1808 = vunpack.c.l.b16 %v1614
    %v1809 = vunpack.c.h.b16 %v1614
    %v1810 = vunpack.c.l.b16 %v1615
    %v1811 = vunpack.c.h.b16 %v1615
    %v1812 = vunpack.c.l.b16 %v1616
    %v1813 = vunpack.c.h.b16 %v1616
    %v1814 = vunpack.c.l.b16 %v1617
    %v1815 = vunpack.c.h.b16 %v1617
    %v1816 = vunpack.c.l.b16 %v1618
    %v1817 = vunpack.c.h.b16 %v1618
    %v1818 = vunpack.c.l.b16 %v1619
    %v1819 = vunpack.c.h.b16 %v1619
    %v1820 = vunpack.c.l.b16 %v1620
    %v1821 = vunpack.c.h.b16 %v1620
    %v1822 = vunpack.c.l.b16 %v1621
    %v1823 = vunpack.c.h.b16 %v1621
    %v1824 = vunpack.c.l.b16 %v1622
    %v1825 = vunpack.c.h.b16 %v1622
    %v1826 = vunpack.c.l.b16 %v1623
    %v1827 = vunpack.c.h.b16 %v1623
    %v1828 = vunpack.c.l.b16 %v1624
    %v1829 = vunpack.c.h.b16 %v1624
    %v1830 = vunpack.c.l.b16 %v1625
    %v1831 = vunpack.c.h.b16 %v1625
    %v1832 = vunpack.c.l.b16 %v1626
    %v1833 = vunpack.c.h.b16 %v1626
    %v1834 = vunpack.c.l.b16 %v1627
    %v1835 = vunpack.c.h.b16 %v1627
    %v1836 = vunpack.c.l.b16 %v1628
    %v1837 = vunpack.c.h.b16 %v1628
    %v1838 = vunpack.c.l.b16 %v1629
    %v1839 = vunpack.c.h.b16 %v1629
    %v1840 = vunpack.c.l.b16 %v1630
    %v1841 = vunpack.c.h.b16 %v1630
    %v1842 = vunpack.c.l.b16 %v1631
    %v1843 = vunpack.c.h.b16 %v1631
    %v1844 = vunpack.c.l.b16 %v1632
    %v1845 = vunpack.c.h.b16 %v1632
    %v1846 = vunpack.c.l.b16 %v1633
    %v1847 = vunpack.c.h.b16 %v1633
    %v1848 = vunpack.c.l.b16 %v1634
    %v1849 = vunpack.c.h.b16 %v1634
    %v1850 = vunpack.c.l.b16 %v1635
    %v1851 = vunpack.c.h.b16 %v1635
    %v1852 = vunpack.c.l.b16 %v1636
    %v1853 = vunpack.c.h.b16 %v1636
    %v1854 = vunpack.c.l.b16 %v1637
    %v1855 = vunpack.c.h.b16 %v1637
    %v1856 = vunpack.c.l.b16 %v1638
    %v1857 = vunpack.c.h.b16 %v1638
    %v1858 = vunpack.c.l.b16 %v1639
    %v1859 = vunpack.c.h.b16 %v1639
    %v1860 = vunpack.c.l.b16 %v1640
    %v1861 = vunpack.c.h.b16 %v1640
    %v1862 = vunpack.c.l.b16 %v1641
    %v1863 = vunpack.c.h.b16 %v1641
    %v1864 = vunpack.c.l.b16 %v1642
    %v1865 = vunpack.c.h.b16 %v1642
    %v1866 = vunpack.c.l.b16 %v1643
    %v1867 = vunpack.c.h.b16 %v1643
    %v1868 = vunpack.c.l.b16 %v1644
    %v1869 = vunpack.c.h.b16 %v1644
    %v1870 = vunpack.c.l.b16 %v1645
    %v1871 = vunpack.c.h.b16 %v1645
    %v1872 = vunpack.c.l.b16 %v1646
    %v1873 = vunpack.c.h.b16 %v1646
    %v1874 = vunpack.c.l.b16 %v1647
    %v1875 = vunpack.c.h.b16 %v1647
    %v1876 = vunpack.c.l.b16 %v1648
    %v1877 = vunpack.c.h.b16 %v1648
    %v1878 = vunpack.c.l.b16 %v1649
    %v1879 = vunpack.c.h.b16 %v1649
    %v1880 = vunpack.c.l.b16 %v1650
    %v1881 = vunpack.c.h.b16 %v1650
    %v1882 = vunpack.c.l.b16 %v1651
    %v1883 = vunpack.c.h.b16 %v1651
    %v1884 = vunpack.c.l.b16 %v1652
    %v1885 = vunpack.c.h.b16 %v1652
    %v1886 = vunpack.c.l.b16 %v1653
    %v1887 = vunpack.c.h.b16 %v1653
    %v1888 = vpack.c.b16 %v1762, %v1760
    %v1889 = vpack.c.b16 %v1763, %v1761
    %v1890 = vpack.c.b16 %v1766, %v1764
    %v1891 = vpack.c.b16 %v1767, %v1765
    %v1892 = vpack.c.b16 %v1770, %v1768
    %v1893 = vpack.c.b16 %v1771, %v1769
    %v1894 = vpack.c.b16 %v1774, %v1772
    %v1895 = vpack.c.b16 %v1775, %v1773
    %v1896 = vpack.c.b16 %v1778, %v1776
    %v1897 = vpack.c.b16 %v1779, %v1777
    %v1898 = vpack.c.b16 %v1782, %v1780
    %v1899 = vpack.c.b16 %v1783, %v1781
    %v1900 = vpack.c.b16 %v1786, %v1784
    %v1901 = vpack.c.b16 %v1787, %v1785
    %v1902 = vpack.c.b16 %v1790, %v1788
    %v1903 = vpack.c.b16 %v1791, %v1789
    %v1904 = vpack.c.b16 %v1794, %v1792
    %v1905 = vpack.c.b16 %v1795, %v1793
    %v1906 = vpack.c.b16 %v1798, %v1796
    %v1907 = vpack.c.b16 %v1799, %v1797
    %v1908 = vpack.c.b16 %v1802, %v1800
    %v1909 = vpack.c.b16 %v1803, %v1801
    %v1910 = vpack.c.b16 %v1806, %v1804
    %v1911 = vpack.c.b16 %v1807, %v1805
    %v1912 = vpack.c.b16 %v1810, %v1808
    %v1913 = vpack.c.b16 %v1811, %v1809
    %v1914 = vpack.c.b16 %v1814, %v1812
    %v1915 = vpack.c.b16 %v1815, %v1813
    %v1916 = vpack.c.b16 %v1818, %v1816
    %v1917 = vpack.c.b16 %v1819, %v1817
    %v1918 = vpack.c.b16 %v1822, %v1820
    %v1919 = vpack.c.b16 %v1823, %v1821
    %v1920 = vpack.c.b16 %v1826, %v1824
    %v1921 = vpack.c.b16 %v1827, %v1825
    %v1922 = vpack.c.b16 %v1830, %v1828
    %v1923 = vpack.c.b16 %v1831, %v1829
    %v1924 = vpack.c.b16 %v1834, %v1832
    %v1925 = vpack.c.b16 %v1835, %v1833
    %v1926 = vpack.c.b16 %v1838, %v1836
    %v1927 = vpack.c.b16 %v1839, %v1837
    %v1928 = vpack.c.b16 %v1842, %v1840
    %v1929 = vpack.c.b16 %v1843, %v1841
    %v1930 = vpack.c.b16 %v1846, %v1844
    %v1931 = vpack.c.b16 %v1847, %v1845
    %v1932 = vpack.c.b16 %v1850, %v1848
    %v1933 = vpack.c.b16 %v1851, %v1849
    %v1934 = vpack.c.b16 %v1854, %v1852
    %v1935 = vpack.c.b16 %v1855, %v1853
    %v1936 = vpack.c.b16 %v1858, %v1856
    %v1937 = vpack.c.b16 %v1859, %v1857
    %v1938 = vpack.c.b16 %v1862, %v1860
    %v1939 = vpack.c.b16 %v1863, %v1861
    %v1940 = vpack.c.b16 %v1866, %v1864
    %v1941 = vpack.c.b16 %v1867, %v1865
    %v1942 = vpack.c.b16 %v1870, %v1868
    %v1943 = vpack.c.b16 %v1871, %v1869
    %v1944 = vpack.c.b16 %v1874, %v1872
    %v1945 = vpack.c.b16 %v1875, %v1873
    %v1946 = vpack.c.b16 %v1878, %v1876
    %v1947 = vpack.c.b16 %v1879, %v1877
    %v1948 = vpack.c.b16 %v1882, %v1880
    %v1949 = vpack.c.b16 %v1883, %v1881
    %v1950 = vpack.c.b16 %v1886, %v1884
    %v1951 = vpack.c.b16 %v1887, %v1885
    %2016 = vmatprep.subr.bf16.mxu0 %v1889
    %2017 = vmatpush1.bf16.msra.mxu0 %v1888
    %2018 = vmatprep.subr.bf16.mxu0 %v1891
    %2019 = vmatpush1.bf16.msra.mxu0 %v1890
    %2020 = vmatprep.subr.bf16.mxu0 %v1893
    %2021 = vmatpush1.bf16.msra.mxu0 %v1892
    %2022 = vmatprep.subr.bf16.mxu0 %v1895
    %2023 = vmatpush1.bf16.msra.mxu0 %v1894
    %2024 = vmatprep.subr.bf16.mxu0 %v1897
    %2025 = vmatpush1.bf16.msra.mxu0 %v1896
    %2026 = vmatprep.subr.bf16.mxu0 %v1899
    %2027 = vmatpush1.bf16.msra.mxu0 %v1898
    %2028 = vmatprep.subr.bf16.mxu0 %v1901
    %2029 = vmatpush1.bf16.msra.mxu0 %v1900
    %2030 = vmatprep.subr.bf16.mxu0 %v1903
    %2031 = vmatpush1.bf16.msra.mxu0 %v1902
    %2032 = vmatprep.subr.bf16.mxu0 %v1905
    %2033 = vmatpush1.bf16.msra.mxu0 %v1904
    %2034 = vmatprep.subr.bf16.mxu0 %v1907
    %2035 = vmatpush1.bf16.msra.mxu0 %v1906
    %2036 = vmatprep.subr.bf16.mxu0 %v1909
    %2037 = vmatpush1.bf16.msra.mxu0 %v1908
    %2038 = vmatprep.subr.bf16.mxu0 %v1911
    %2039 = vmatpush1.bf16.msra.mxu0 %v1910
    %2040 = vmatprep.subr.bf16.mxu0 %v1913
    %2041 = vmatpush1.bf16.msra.mxu0 %v1912
    %2042 = vmatprep.subr.bf16.mxu0 %v1915
    %2043 = vmatpush1.bf16.msra.mxu0 %v1914
    %2044 = vmatprep.subr.bf16.mxu0 %v1917
    %2045 = vmatpush1.bf16.msra.mxu0 %v1916
    %2046 = vmatprep.subr.bf16.mxu0 %v1919
    %2047 = vmatpush1.bf16.msra.mxu0 %v1918
    %2048 = vmatprep.mubr.bf16.mxu0 %v1689
    %2049 = vmatmul.mubr.bf16.gmra.mrb[0].mxu0 %v1682
    %v2050 = vpop.f32.mrb[0].mxu0
    %v2051 = vadd.f32 %v1660, %v2050
    %v2052 = vpop.f32.mrb[0].mxu0
    %v2053 = vadd.f32 %v1664, %v2052
    %v2054 = vpop.f32.mrb[0].mxu0
    %v2055 = vpop.f32.mrb[0].mxu0
    %2056 = vdwg.mxu0
    %2057 = vmatprep.subr.bf16.mxu0 %v1921
    %2058 = vmatpush1.bf16.msra.mxu0 %v1920
    %2059 = vmatprep.subr.bf16.mxu0 %v1923
    %2060 = vmatpush1.bf16.msra.mxu0 %v1922
    %2061 = vmatprep.subr.bf16.mxu0 %v1925
    %2062 = vmatpush1.bf16.msra.mxu0 %v1924
    %2063 = vmatprep.subr.bf16.mxu0 %v1927
    %2064 = vmatpush1.bf16.msra.mxu0 %v1926
    %2065 = vmatprep.subr.bf16.mxu0 %v1929
    %2066 = vmatpush1.bf16.msra.mxu0 %v1928
    %2067 = vmatprep.subr.bf16.mxu0 %v1931
    %2068 = vmatpush1.bf16.msra.mxu0 %v1930
    %2069 = vmatprep.subr.bf16.mxu0 %v1933
    %2070 = vmatpush1.bf16.msra.mxu0 %v1932
    %2071 = vmatprep.subr.bf16.mxu0 %v1935
    %2072 = vmatpush1.bf16.msra.mxu0 %v1934
    %2073 = vmatprep.subr.bf16.mxu0 %v1937
    %2074 = vmatpush1.bf16.msra.mxu0 %v1936
    %2075 = vmatprep.subr.bf16.mxu0 %v1939
    %2076 = vmatpush1.bf16.msra.mxu0 %v1938
    %2077 = vmatprep.subr.bf16.mxu0 %v1941
    %2078 = vmatpush1.bf16.msra.mxu0 %v1940
    %2079 = vmatprep.subr.bf16.mxu0 %v1943
    %2080 = vmatpush1.bf16.msra.mxu0 %v1942
    %2081 = vmatprep.subr.bf16.mxu0 %v1945
    %2082 = vmatpush1.bf16.msra.mxu0 %v1944
    %2083 = vmatprep.subr.bf16.mxu0 %v1947
    %2084 = vmatpush1.bf16.msra.mxu0 %v1946
    %2085 = vmatprep.subr.bf16.mxu0 %v1949
    %2086 = vmatpush1.bf16.msra.mxu0 %v1948
    %2087 = vmatprep.subr.bf16.mxu0 %v1951
    %2088 = vmatpush1.bf16.msra.mxu0 %v1950
    %2089 = vmatprep.mubr.bf16.mxu0 %v1691
    %2090 = vmatmul.mubr.bf16.gmra.mrb[0].mxu0 %v1690
    %v2091 = vpop.f32.mrb[0].mxu0
    %v2092 = vadd.f32 %v2051, %v2091
    %v2093 = vpop.f32.mrb[0].mxu0
    %v2094 = vadd.f32 %v2053, %v2093
    %v2095 = vpop.f32.mrb[0].mxu0
    %v2096 = vpop.f32.mrb[0].mxu0
    %2097 = vdwg.mxu0
    %v2098 = vmax.f32 %v2092, 0.0
    %v2099 = vmax.f32 %v2094, 0.0
    %v2102 = vcombine.low %v2098, %v2099
    %v2104 = vunpack.c.l.s4 1983009808
    %v2105 = vunpack.c.0.s8 %v2104
    %v2106 = vlaneseq
    %v2107 = vshrl.u32 %v2106, 7
    %v2108 = vsub.s32 %v2105, %v2107
    %v2109 = vrot.slane %v2102, %v2108
    %2111 = vst [vmem:[#allocation2 + $0xc] sm:$0xf] %v2109
    %s2112 = scalar_lea.vmem %s0, 16
    %v2113 = vld [vmem:[%s2112] sm:$0xf]
    %s2114 = scalar_lea.vmem %s1, 2048
    %v2115 = vld [vmem:[%s2114] sm:$0xff]
    %v2116 = vld [vmem:[%s2114 + $0x8] sm:$0xff]
    %v2117 = vld [vmem:[%s2114 + $0x10] sm:$0xff]
    %v2118 = vld [vmem:[%s2114 + $0x18] sm:$0xff]
    %v2119 = vld [vmem:[%s2114 + $0x20] sm:$0xff]
    %v2120 = vld [vmem:[%s2114 + $0x28] sm:$0xff]
    %v2121 = vld [vmem:[%s2114 + $0x30] sm:$0xff]
    %v2122 = vld [vmem:[%s2114 + $0x38] sm:$0xff]
    %v2123 = vld [vmem:[%s2114 + $0x40] sm:$0xff]
    %v2124 = vld [vmem:[%s2114 + $0x48] sm:$0xff]
    %v2125 = vld [vmem:[%s2114 + $0x50] sm:$0xff]
    %v2126 = vld [vmem:[%s2114 + $0x58] sm:$0xff]
    %v2127 = vld [vmem:[%s2114 + $0x60] sm:$0xff]
    %v2128 = vld [vmem:[%s2114 + $0x68] sm:$0xff]
    %v2129 = vld [vmem:[%s2114 + $0x70] sm:$0xff]
    %v2130 = vld [vmem:[%s2114 + $0x78] sm:$0xff]
    %v2131 = vld [vmem:[%s2114 + $0x80] sm:$0xff]
    %v2132 = vld [vmem:[%s2114 + $0x88] sm:$0xff]
    %v2133 = vld [vmem:[%s2114 + $0x90] sm:$0xff]
    %v2134 = vld [vmem:[%s2114 + $0x98] sm:$0xff]
    %v2135 = vld [vmem:[%s2114 + $0xa0] sm:$0xff]
    %v2136 = vld [vmem:[%s2114 + $0xa8] sm:$0xff]
    %v2137 = vld [vmem:[%s2114 + $0xb0] sm:$0xff]
    %v2138 = vld [vmem:[%s2114 + $0xb8] sm:$0xff]
    %v2139 = vld [vmem:[%s2114 + $0xc0] sm:$0xff]
    %v2140 = vld [vmem:[%s2114 + $0xc8] sm:$0xff]
    %v2141 = vld [vmem:[%s2114 + $0xd0] sm:$0xff]
    %v2142 = vld [vmem:[%s2114 + $0xd8] sm:$0xff]
    %v2143 = vld [vmem:[%s2114 + $0xe0] sm:$0xff]
    %v2144 = vld [vmem:[%s2114 + $0xe8] sm:$0xff]
    %v2145 = vld [vmem:[%s2114 + $0xf0] sm:$0xff]
    %v2146 = vld [vmem:[%s2114 + $0xf8] sm:$0xff]
    %v2147 = vld [vmem:[%s2114 + $0x100] sm:$0xff]
    %v2148 = vld [vmem:[%s2114 + $0x108] sm:$0xff]
    %v2149 = vld [vmem:[%s2114 + $0x110] sm:$0xff]
    %v2150 = vld [vmem:[%s2114 + $0x118] sm:$0xff]
    %v2151 = vld [vmem:[%s2114 + $0x120] sm:$0xff]
    %v2152 = vld [vmem:[%s2114 + $0x128] sm:$0xff]
    %v2153 = vld [vmem:[%s2114 + $0x130] sm:$0xff]
    %v2154 = vld [vmem:[%s2114 + $0x138] sm:$0xff]
    %v2155 = vld [vmem:[%s2114 + $0x140] sm:$0xff]
    %v2156 = vld [vmem:[%s2114 + $0x148] sm:$0xff]
    %v2157 = vld [vmem:[%s2114 + $0x150] sm:$0xff]
    %v2158 = vld [vmem:[%s2114 + $0x158] sm:$0xff]
    %v2159 = vld [vmem:[%s2114 + $0x160] sm:$0xff]
    %v2160 = vld [vmem:[%s2114 + $0x168] sm:$0xff]
    %v2161 = vld [vmem:[%s2114 + $0x170] sm:$0xff]
    %v2162 = vld [vmem:[%s2114 + $0x178] sm:$0xff]
    %v2163 = vld [vmem:[%s2114 + $0x180] sm:$0xff]
    %v2164 = vld [vmem:[%s2114 + $0x188] sm:$0xff]
    %v2165 = vld [vmem:[%s2114 + $0x190] sm:$0xff]
    %v2166 = vld [vmem:[%s2114 + $0x198] sm:$0xff]
    %v2167 = vld [vmem:[%s2114 + $0x1a0] sm:$0xff]
    %v2168 = vld [vmem:[%s2114 + $0x1a8] sm:$0xff]
    %v2169 = vld [vmem:[%s2114 + $0x1b0] sm:$0xff]
    %v2170 = vld [vmem:[%s2114 + $0x1b8] sm:$0xff]
    %v2171 = vld [vmem:[%s2114 + $0x1c0] sm:$0xff]
    %v2172 = vld [vmem:[%s2114 + $0x1c8] sm:$0xff]
    %v2173 = vld [vmem:[%s2114 + $0x1d0] sm:$0xff]
    %v2174 = vld [vmem:[%s2114 + $0x1d8] sm:$0xff]
    %v2175 = vld [vmem:[%s2114 + $0x1e0] sm:$0xff]
    %v2176 = vld [vmem:[%s2114 + $0x1e8] sm:$0xff]
    %v2177 = vld [vmem:[%s2114 + $0x1f0] sm:$0xff]
    %v2178 = vld [vmem:[%s2114 + $0x1f8] sm:$0xff]
    %s2179 = scalar_lea.vmem %s2, 8
    %v2180 = vld [vmem:[%s2179] sm:$0x3]
    %v2182 = vlaneseq
    %v2183 = vshrl.u32 %v2182, 7
    %v2184 = vsub.s32 0, %v2183
    %v2185 = vrot.slane %v2180, %v2184
    %v2186 = vlaneseq
    %v2187 = vshrl.u32 %v2186, 7
    %v2188 = vsub.s32 1, %v2187
    %v2189 = vrot.slane %v2180, %v2188
    %v2194 = vunpack.c.l.s4 1966171168
    %v2195 = vunpack.c.0.s8 %v2194
    %v2196 = vlaneseq
    %v2197 = vshrl.u32 %v2196, 7
    %v2198 = vsub.s32 %v2195, %v2197
    %v2199 = vrot.slane %v2113, %v2198
    %v2200 = vcombine.high %v2199, %v2199
    %v2202 = vunpack.c.l.s4 1966171168
    %v2203 = vunpack.c.0.s8 %v2202
    %v2204 = vlaneseq
    %v2205 = vshrl.u32 %v2204, 7
    %v2206 = vsub.s32 %v2203, %v2205
    %v2207 = vrot.slane %v2199, %v2206
    %v2209 = vunpack.c.l.s4 1966171168
    %v2210 = vunpack.c.0.s8 %v2209
    %v2211 = vlaneseq
    %v2212 = vshrl.u32 %v2211, 7
    %v2213 = vsub.s32 %v2210, %v2212
    %v2214 = vrot.slane %v2200, %v2213
    %v2215 = vcombine.high %v2207, %v2207
    %v2216 = vcombine.high %v2214, %v2214
    %v2285 = vunpack.c.l.b16 %v2115
    %v2286 = vunpack.c.h.b16 %v2115
    %v2287 = vunpack.c.l.b16 %v2116
    %v2288 = vunpack.c.h.b16 %v2116
    %v2289 = vunpack.c.l.b16 %v2117
    %v2290 = vunpack.c.h.b16 %v2117
    %v2291 = vunpack.c.l.b16 %v2118
    %v2292 = vunpack.c.h.b16 %v2118
    %v2293 = vunpack.c.l.b16 %v2119
    %v2294 = vunpack.c.h.b16 %v2119
    %v2295 = vunpack.c.l.b16 %v2120
    %v2296 = vunpack.c.h.b16 %v2120
    %v2297 = vunpack.c.l.b16 %v2121
    %v2298 = vunpack.c.h.b16 %v2121
    %v2299 = vunpack.c.l.b16 %v2122
    %v2300 = vunpack.c.h.b16 %v2122
    %v2301 = vunpack.c.l.b16 %v2123
    %v2302 = vunpack.c.h.b16 %v2123
    %v2303 = vunpack.c.l.b16 %v2124
    %v2304 = vunpack.c.h.b16 %v2124
    %v2305 = vunpack.c.l.b16 %v2125
    %v2306 = vunpack.c.h.b16 %v2125
    %v2307 = vunpack.c.l.b16 %v2126
    %v2308 = vunpack.c.h.b16 %v2126
    %v2309 = vunpack.c.l.b16 %v2127
    %v2310 = vunpack.c.h.b16 %v2127
    %v2311 = vunpack.c.l.b16 %v2128
    %v2312 = vunpack.c.h.b16 %v2128
    %v2313 = vunpack.c.l.b16 %v2129
    %v2314 = vunpack.c.h.b16 %v2129
    %v2315 = vunpack.c.l.b16 %v2130
    %v2316 = vunpack.c.h.b16 %v2130
    %v2317 = vunpack.c.l.b16 %v2131
    %v2318 = vunpack.c.h.b16 %v2131
    %v2319 = vunpack.c.l.b16 %v2132
    %v2320 = vunpack.c.h.b16 %v2132
    %v2321 = vunpack.c.l.b16 %v2133
    %v2322 = vunpack.c.h.b16 %v2133
    %v2323 = vunpack.c.l.b16 %v2134
    %v2324 = vunpack.c.h.b16 %v2134
    %v2325 = vunpack.c.l.b16 %v2135
    %v2326 = vunpack.c.h.b16 %v2135
    %v2327 = vunpack.c.l.b16 %v2136
    %v2328 = vunpack.c.h.b16 %v2136
    %v2329 = vunpack.c.l.b16 %v2137
    %v2330 = vunpack.c.h.b16 %v2137
    %v2331 = vunpack.c.l.b16 %v2138
    %v2332 = vunpack.c.h.b16 %v2138
    %v2333 = vunpack.c.l.b16 %v2139
    %v2334 = vunpack.c.h.b16 %v2139
    %v2335 = vunpack.c.l.b16 %v2140
    %v2336 = vunpack.c.h.b16 %v2140
    %v2337 = vunpack.c.l.b16 %v2141
    %v2338 = vunpack.c.h.b16 %v2141
    %v2339 = vunpack.c.l.b16 %v2142
    %v2340 = vunpack.c.h.b16 %v2142
    %v2341 = vunpack.c.l.b16 %v2143
    %v2342 = vunpack.c.h.b16 %v2143
    %v2343 = vunpack.c.l.b16 %v2144
    %v2344 = vunpack.c.h.b16 %v2144
    %v2345 = vunpack.c.l.b16 %v2145
    %v2346 = vunpack.c.h.b16 %v2145
    %v2347 = vunpack.c.l.b16 %v2146
    %v2348 = vunpack.c.h.b16 %v2146
    %v2349 = vunpack.c.l.b16 %v2147
    %v2350 = vunpack.c.h.b16 %v2147
    %v2351 = vunpack.c.l.b16 %v2148
    %v2352 = vunpack.c.h.b16 %v2148
    %v2353 = vunpack.c.l.b16 %v2149
    %v2354 = vunpack.c.h.b16 %v2149
    %v2355 = vunpack.c.l.b16 %v2150
    %v2356 = vunpack.c.h.b16 %v2150
    %v2357 = vunpack.c.l.b16 %v2151
    %v2358 = vunpack.c.h.b16 %v2151
    %v2359 = vunpack.c.l.b16 %v2152
    %v2360 = vunpack.c.h.b16 %v2152
    %v2361 = vunpack.c.l.b16 %v2153
    %v2362 = vunpack.c.h.b16 %v2153
    %v2363 = vunpack.c.l.b16 %v2154
    %v2364 = vunpack.c.h.b16 %v2154
    %v2365 = vunpack.c.l.b16 %v2155
    %v2366 = vunpack.c.h.b16 %v2155
    %v2367 = vunpack.c.l.b16 %v2156
    %v2368 = vunpack.c.h.b16 %v2156
    %v2369 = vunpack.c.l.b16 %v2157
    %v2370 = vunpack.c.h.b16 %v2157
    %v2371 = vunpack.c.l.b16 %v2158
    %v2372 = vunpack.c.h.b16 %v2158
    %v2373 = vunpack.c.l.b16 %v2159
    %v2374 = vunpack.c.h.b16 %v2159
    %v2375 = vunpack.c.l.b16 %v2160
    %v2376 = vunpack.c.h.b16 %v2160
    %v2377 = vunpack.c.l.b16 %v2161
    %v2378 = vunpack.c.h.b16 %v2161
    %v2379 = vunpack.c.l.b16 %v2162
    %v2380 = vunpack.c.h.b16 %v2162
    %v2381 = vunpack.c.l.b16 %v2163
    %v2382 = vunpack.c.h.b16 %v2163
    %v2383 = vunpack.c.l.b16 %v2164
    %v2384 = vunpack.c.h.b16 %v2164
    %v2385 = vunpack.c.l.b16 %v2165
    %v2386 = vunpack.c.h.b16 %v2165
    %v2387 = vunpack.c.l.b16 %v2166
    %v2388 = vunpack.c.h.b16 %v2166
    %v2389 = vunpack.c.l.b16 %v2167
    %v2390 = vunpack.c.h.b16 %v2167
    %v2391 = vunpack.c.l.b16 %v2168
    %v2392 = vunpack.c.h.b16 %v2168
    %v2393 = vunpack.c.l.b16 %v2169
    %v2394 = vunpack.c.h.b16 %v2169
    %v2395 = vunpack.c.l.b16 %v2170
    %v2396 = vunpack.c.h.b16 %v2170
    %v2397 = vunpack.c.l.b16 %v2171
    %v2398 = vunpack.c.h.b16 %v2171
    %v2399 = vunpack.c.l.b16 %v2172
    %v2400 = vunpack.c.h.b16 %v2172
    %v2401 = vunpack.c.l.b16 %v2173
    %v2402 = vunpack.c.h.b16 %v2173
    %v2403 = vunpack.c.l.b16 %v2174
    %v2404 = vunpack.c.h.b16 %v2174
    %v2405 = vunpack.c.l.b16 %v2175
    %v2406 = vunpack.c.h.b16 %v2175
    %v2407 = vunpack.c.l.b16 %v2176
    %v2408 = vunpack.c.h.b16 %v2176
    %v2409 = vunpack.c.l.b16 %v2177
    %v2410 = vunpack.c.h.b16 %v2177
    %v2411 = vunpack.c.l.b16 %v2178
    %v2412 = vunpack.c.h.b16 %v2178
    %v2413 = vpack.c.b16 %v2287, %v2285
    %v2414 = vpack.c.b16 %v2288, %v2286
    %v2415 = vpack.c.b16 %v2291, %v2289
    %v2416 = vpack.c.b16 %v2292, %v2290
    %v2417 = vpack.c.b16 %v2295, %v2293
    %v2418 = vpack.c.b16 %v2296, %v2294
    %v2419 = vpack.c.b16 %v2299, %v2297
    %v2420 = vpack.c.b16 %v2300, %v2298
    %v2421 = vpack.c.b16 %v2303, %v2301
    %v2422 = vpack.c.b16 %v2304, %v2302
    %v2423 = vpack.c.b16 %v2307, %v2305
    %v2424 = vpack.c.b16 %v2308, %v2306
    %v2425 = vpack.c.b16 %v2311, %v2309
    %v2426 = vpack.c.b16 %v2312, %v2310
    %v2427 = vpack.c.b16 %v2315, %v2313
    %v2428 = vpack.c.b16 %v2316, %v2314
    %v2429 = vpack.c.b16 %v2319, %v2317
    %v2430 = vpack.c.b16 %v2320, %v2318
    %v2431 = vpack.c.b16 %v2323, %v2321
    %v2432 = vpack.c.b16 %v2324, %v2322
    %v2433 = vpack.c.b16 %v2327, %v2325
    %v2434 = vpack.c.b16 %v2328, %v2326
    %v2435 = vpack.c.b16 %v2331, %v2329
    %v2436 = vpack.c.b16 %v2332, %v2330
    %v2437 = vpack.c.b16 %v2335, %v2333
    %v2438 = vpack.c.b16 %v2336, %v2334
    %v2439 = vpack.c.b16 %v2339, %v2337
    %v2440 = vpack.c.b16 %v2340, %v2338
    %v2441 = vpack.c.b16 %v2343, %v2341
    %v2442 = vpack.c.b16 %v2344, %v2342
    %v2443 = vpack.c.b16 %v2347, %v2345
    %v2444 = vpack.c.b16 %v2348, %v2346
    %v2445 = vpack.c.b16 %v2351, %v2349
    %v2446 = vpack.c.b16 %v2352, %v2350
    %v2447 = vpack.c.b16 %v2355, %v2353
    %v2448 = vpack.c.b16 %v2356, %v2354
    %v2449 = vpack.c.b16 %v2359, %v2357
    %v2450 = vpack.c.b16 %v2360, %v2358
    %v2451 = vpack.c.b16 %v2363, %v2361
    %v2452 = vpack.c.b16 %v2364, %v2362
    %v2453 = vpack.c.b16 %v2367, %v2365
    %v2454 = vpack.c.b16 %v2368, %v2366
    %v2455 = vpack.c.b16 %v2371, %v2369
    %v2456 = vpack.c.b16 %v2372, %v2370
    %v2457 = vpack.c.b16 %v2375, %v2373
    %v2458 = vpack.c.b16 %v2376, %v2374
    %v2459 = vpack.c.b16 %v2379, %v2377
    %v2460 = vpack.c.b16 %v2380, %v2378
    %v2461 = vpack.c.b16 %v2383, %v2381
    %v2462 = vpack.c.b16 %v2384, %v2382
    %v2463 = vpack.c.b16 %v2387, %v2385
    %v2464 = vpack.c.b16 %v2388, %v2386
    %v2465 = vpack.c.b16 %v2391, %v2389
    %v2466 = vpack.c.b16 %v2392, %v2390
    %v2467 = vpack.c.b16 %v2395, %v2393
    %v2468 = vpack.c.b16 %v2396, %v2394
    %v2469 = vpack.c.b16 %v2399, %v2397
    %v2470 = vpack.c.b16 %v2400, %v2398
    %v2471 = vpack.c.b16 %v2403, %v2401
    %v2472 = vpack.c.b16 %v2404, %v2402
    %v2473 = vpack.c.b16 %v2407, %v2405
    %v2474 = vpack.c.b16 %v2408, %v2406
    %v2475 = vpack.c.b16 %v2411, %v2409
    %v2476 = vpack.c.b16 %v2412, %v2410
    %2541 = vmatprep.subr.bf16.mxu0 %v2414
    %2542 = vmatpush1.bf16.msra.mxu0 %v2413
    %2543 = vmatprep.subr.bf16.mxu0 %v2416
    %2544 = vmatpush1.bf16.msra.mxu0 %v2415
    %2545 = vmatprep.subr.bf16.mxu0 %v2418
    %2546 = vmatpush1.bf16.msra.mxu0 %v2417
    %2547 = vmatprep.subr.bf16.mxu0 %v2420
    %2548 = vmatpush1.bf16.msra.mxu0 %v2419
    %2549 = vmatprep.subr.bf16.mxu0 %v2422
    %2550 = vmatpush1.bf16.msra.mxu0 %v2421
    %2551 = vmatprep.subr.bf16.mxu0 %v2424
    %2552 = vmatpush1.bf16.msra.mxu0 %v2423
    %2553 = vmatprep.subr.bf16.mxu0 %v2426
    %2554 = vmatpush1.bf16.msra.mxu0 %v2425
    %2555 = vmatprep.subr.bf16.mxu0 %v2428
    %2556 = vmatpush1.bf16.msra.mxu0 %v2427
    %2557 = vmatprep.subr.bf16.mxu0 %v2430
    %2558 = vmatpush1.bf16.msra.mxu0 %v2429
    %2559 = vmatprep.subr.bf16.mxu0 %v2432
    %2560 = vmatpush1.bf16.msra.mxu0 %v2431
    %2561 = vmatprep.subr.bf16.mxu0 %v2434
    %2562 = vmatpush1.bf16.msra.mxu0 %v2433
    %2563 = vmatprep.subr.bf16.mxu0 %v2436
    %2564 = vmatpush1.bf16.msra.mxu0 %v2435
    %2565 = vmatprep.subr.bf16.mxu0 %v2438
    %2566 = vmatpush1.bf16.msra.mxu0 %v2437
    %2567 = vmatprep.subr.bf16.mxu0 %v2440
    %2568 = vmatpush1.bf16.msra.mxu0 %v2439
    %2569 = vmatprep.subr.bf16.mxu0 %v2442
    %2570 = vmatpush1.bf16.msra.mxu0 %v2441
    %2571 = vmatprep.subr.bf16.mxu0 %v2444
    %2572 = vmatpush1.bf16.msra.mxu0 %v2443
    %2573 = vmatprep.mubr.bf16.mxu0 %v2214
    %2574 = vmatmul.mubr.bf16.gmra.mrb[0].mxu0 %v2207
    %v2575 = vpop.f32.mrb[0].mxu0
    %v2576 = vadd.f32 %v2185, %v2575
    %v2577 = vpop.f32.mrb[0].mxu0
    %v2578 = vadd.f32 %v2189, %v2577
    %v2579 = vpop.f32.mrb[0].mxu0
    %v2580 = vpop.f32.mrb[0].mxu0
    %2581 = vdwg.mxu0
    %2582 = vmatprep.subr.bf16.mxu0 %v2446
    %2583 = vmatpush1.bf16.msra.mxu0 %v2445
    %2584 = vmatprep.subr.bf16.mxu0 %v2448
    %2585 = vmatpush1.bf16.msra.mxu0 %v2447
    %2586 = vmatprep.subr.bf16.mxu0 %v2450
    %2587 = vmatpush1.bf16.msra.mxu0 %v2449
    %2588 = vmatprep.subr.bf16.mxu0 %v2452
    %2589 = vmatpush1.bf16.msra.mxu0 %v2451
    %2590 = vmatprep.subr.bf16.mxu0 %v2454
    %2591 = vmatpush1.bf16.msra.mxu0 %v2453
    %2592 = vmatprep.subr.bf16.mxu0 %v2456
    %2593 = vmatpush1.bf16.msra.mxu0 %v2455
    %2594 = vmatprep.subr.bf16.mxu0 %v2458
    %2595 = vmatpush1.bf16.msra.mxu0 %v2457
    %2596 = vmatprep.subr.bf16.mxu0 %v2460
    %2597 = vmatpush1.bf16.msra.mxu0 %v2459
    %2598 = vmatprep.subr.bf16.mxu0 %v2462
    %2599 = vmatpush1.bf16.msra.mxu0 %v2461
    %2600 = vmatprep.subr.bf16.mxu0 %v2464
    %2601 = vmatpush1.bf16.msra.mxu0 %v2463
    %2602 = vmatprep.subr.bf16.mxu0 %v2466
    %2603 = vmatpush1.bf16.msra.mxu0 %v2465
    %2604 = vmatprep.subr.bf16.mxu0 %v2468
    %2605 = vmatpush1.bf16.msra.mxu0 %v2467
    %2606 = vmatprep.subr.bf16.mxu0 %v2470
    %2607 = vmatpush1.bf16.msra.mxu0 %v2469
    %2608 = vmatprep.subr.bf16.mxu0 %v2472
    %2609 = vmatpush1.bf16.msra.mxu0 %v2471
    %2610 = vmatprep.subr.bf16.mxu0 %v2474
    %2611 = vmatpush1.bf16.msra.mxu0 %v2473
    %2612 = vmatprep.subr.bf16.mxu0 %v2476
    %2613 = vmatpush1.bf16.msra.mxu0 %v2475
    %2614 = vmatprep.mubr.bf16.mxu0 %v2216
    %2615 = vmatmul.mubr.bf16.gmra.mrb[0].mxu0 %v2215
    %v2616 = vpop.f32.mrb[0].mxu0
    %v2617 = vadd.f32 %v2576, %v2616
    %v2618 = vpop.f32.mrb[0].mxu0
    %v2619 = vadd.f32 %v2578, %v2618
    %v2620 = vpop.f32.mrb[0].mxu0
    %v2621 = vpop.f32.mrb[0].mxu0
    %2622 = vdwg.mxu0
    %v2623 = vmax.f32 %v2617, 0.0
    %v2624 = vmax.f32 %v2619, 0.0
    %v2627 = vcombine.low %v2623, %v2624
    %v2629 = vunpack.c.l.s4 1983009808
    %v2630 = vunpack.c.0.s8 %v2629
    %v2631 = vlaneseq
    %v2632 = vshrl.u32 %v2631, 7
    %v2633 = vsub.s32 %v2630, %v2632
    %v2634 = vrot.slane %v2627, %v2633
    %2636 = vst [vmem:[#allocation2 + $0x10] sm:$0xf] %v2634
    %s2637 = scalar_lea.vmem %s0, 20
    %v2638 = vld [vmem:[%s2637] sm:$0xf]
    %s2639 = scalar_lea.vmem %s1, 2560
    %v2640 = vld [vmem:[%s2639] sm:$0xff]
    %v2641 = vld [vmem:[%s2639 + $0x8] sm:$0xff]
    %v2642 = vld [vmem:[%s2639 + $0x10] sm:$0xff]
    %v2643 = vld [vmem:[%s2639 + $0x18] sm:$0xff]
    %v2644 = vld [vmem:[%s2639 + $0x20] sm:$0xff]
    %v2645 = vld [vmem:[%s2639 + $0x28] sm:$0xff]
    %v2646 = vld [vmem:[%s2639 + $0x30] sm:$0xff]
    %v2647 = vld [vmem:[%s2639 + $0x38] sm:$0xff]
    %v2648 = vld [vmem:[%s2639 + $0x40] sm:$0xff]
    %v2649 = vld [vmem:[%s2639 + $0x48] sm:$0xff]
    %v2650 = vld [vmem:[%s2639 + $0x50] sm:$0xff]
    %v2651 = vld [vmem:[%s2639 + $0x58] sm:$0xff]
    %v2652 = vld [vmem:[%s2639 + $0x60] sm:$0xff]
    %v2653 = vld [vmem:[%s2639 + $0x68] sm:$0xff]
    %v2654 = vld [vmem:[%s2639 + $0x70] sm:$0xff]
    %v2655 = vld [vmem:[%s2639 + $0x78] sm:$0xff]
    %v2656 = vld [vmem:[%s2639 + $0x80] sm:$0xff]
    %v2657 = vld [vmem:[%s2639 + $0x88] sm:$0xff]
    %v2658 = vld [vmem:[%s2639 + $0x90] sm:$0xff]
    %v2659 = vld [vmem:[%s2639 + $0x98] sm:$0xff]
    %v2660 = vld [vmem:[%s2639 + $0xa0] sm:$0xff]
    %v2661 = vld [vmem:[%s2639 + $0xa8] sm:$0xff]
    %v2662 = vld [vmem:[%s2639 + $0xb0] sm:$0xff]
    %v2663 = vld [vmem:[%s2639 + $0xb8] sm:$0xff]
    %v2664 = vld [vmem:[%s2639 + $0xc0] sm:$0xff]
    %v2665 = vld [vmem:[%s2639 + $0xc8] sm:$0xff]
    %v2666 = vld [vmem:[%s2639 + $0xd0] sm:$0xff]
    %v2667 = vld [vmem:[%s2639 + $0xd8] sm:$0xff]
    %v2668 = vld [vmem:[%s2639 + $0xe0] sm:$0xff]
    %v2669 = vld [vmem:[%s2639 + $0xe8] sm:$0xff]
    %v2670 = vld [vmem:[%s2639 + $0xf0] sm:$0xff]
    %v2671 = vld [vmem:[%s2639 + $0xf8] sm:$0xff]
    %v2672 = vld [vmem:[%s2639 + $0x100] sm:$0xff]
    %v2673 = vld [vmem:[%s2639 + $0x108] sm:$0xff]
    %v2674 = vld [vmem:[%s2639 + $0x110] sm:$0xff]
    %v2675 = vld [vmem:[%s2639 + $0x118] sm:$0xff]
    %v2676 = vld [vmem:[%s2639 + $0x120] sm:$0xff]
    %v2677 = vld [vmem:[%s2639 + $0x128] sm:$0xff]
    %v2678 = vld [vmem:[%s2639 + $0x130] sm:$0xff]
    %v2679 = vld [vmem:[%s2639 + $0x138] sm:$0xff]
    %v2680 = vld [vmem:[%s2639 + $0x140] sm:$0xff]
    %v2681 = vld [vmem:[%s2639 + $0x148] sm:$0xff]
    %v2682 = vld [vmem:[%s2639 + $0x150] sm:$0xff]
    %v2683 = vld [vmem:[%s2639 + $0x158] sm:$0xff]
    %v2684 = vld [vmem:[%s2639 + $0x160] sm:$0xff]
    %v2685 = vld [vmem:[%s2639 + $0x168] sm:$0xff]
    %v2686 = vld [vmem:[%s2639 + $0x170] sm:$0xff]
    %v2687 = vld [vmem:[%s2639 + $0x178] sm:$0xff]
    %v2688 = vld [vmem:[%s2639 + $0x180] sm:$0xff]
    %v2689 = vld [vmem:[%s2639 + $0x188] sm:$0xff]
    %v2690 = vld [vmem:[%s2639 + $0x190] sm:$0xff]
    %v2691 = vld [vmem:[%s2639 + $0x198] sm:$0xff]
    %v2692 = vld [vmem:[%s2639 + $0x1a0] sm:$0xff]
    %v2693 = vld [vmem:[%s2639 + $0x1a8] sm:$0xff]
    %v2694 = vld [vmem:[%s2639 + $0x1b0] sm:$0xff]
    %v2695 = vld [vmem:[%s2639 + $0x1b8] sm:$0xff]
    %v2696 = vld [vmem:[%s2639 + $0x1c0] sm:$0xff]
    %v2697 = vld [vmem:[%s2639 + $0x1c8] sm:$0xff]
    %v2698 = vld [vmem:[%s2639 + $0x1d0] sm:$0xff]
    %v2699 = vld [vmem:[%s2639 + $0x1d8] sm:$0xff]
    %v2700 = vld [vmem:[%s2639 + $0x1e0] sm:$0xff]
    %v2701 = vld [vmem:[%s2639 + $0x1e8] sm:$0xff]
    %v2702 = vld [vmem:[%s2639 + $0x1f0] sm:$0xff]
    %v2703 = vld [vmem:[%s2639 + $0x1f8] sm:$0xff]
    %s2704 = scalar_lea.vmem %s2, 10
    %v2705 = vld [vmem:[%s2704] sm:$0x3]
    %v2707 = vlaneseq
    %v2708 = vshrl.u32 %v2707, 7
    %v2709 = vsub.s32 0, %v2708
    %v2710 = vrot.slane %v2705, %v2709
    %v2711 = vlaneseq
    %v2712 = vshrl.u32 %v2711, 7
    %v2713 = vsub.s32 1, %v2712
    %v2714 = vrot.slane %v2705, %v2713
    %v2719 = vunpack.c.l.s4 1966171168
    %v2720 = vunpack.c.0.s8 %v2719
    %v2721 = vlaneseq
    %v2722 = vshrl.u32 %v2721, 7
    %v2723 = vsub.s32 %v2720, %v2722
    %v2724 = vrot.slane %v2638, %v2723
    %v2725 = vcombine.high %v2724, %v2724
    %v2727 = vunpack.c.l.s4 1966171168
    %v2728 = vunpack.c.0.s8 %v2727
    %v2729 = vlaneseq
    %v2730 = vshrl.u32 %v2729, 7
    %v2731 = vsub.s32 %v2728, %v2730
    %v2732 = vrot.slane %v2724, %v2731
    %v2734 = vunpack.c.l.s4 1966171168
    %v2735 = vunpack.c.0.s8 %v2734
    %v2736 = vlaneseq
    %v2737 = vshrl.u32 %v2736, 7
    %v2738 = vsub.s32 %v2735, %v2737
    %v2739 = vrot.slane %v2725, %v2738
    %v2740 = vcombine.high %v2732, %v2732
    %v2741 = vcombine.high %v2739, %v2739
    %v2810 = vunpack.c.l.b16 %v2640
    %v2811 = vunpack.c.h.b16 %v2640
    %v2812 = vunpack.c.l.b16 %v2641
    %v2813 = vunpack.c.h.b16 %v2641
    %v2814 = vunpack.c.l.b16 %v2642
    %v2815 = vunpack.c.h.b16 %v2642
    %v2816 = vunpack.c.l.b16 %v2643
    %v2817 = vunpack.c.h.b16 %v2643
    %v2818 = vunpack.c.l.b16 %v2644
    %v2819 = vunpack.c.h.b16 %v2644
    %v2820 = vunpack.c.l.b16 %v2645
    %v2821 = vunpack.c.h.b16 %v2645
    %v2822 = vunpack.c.l.b16 %v2646
    %v2823 = vunpack.c.h.b16 %v2646
    %v2824 = vunpack.c.l.b16 %v2647
    %v2825 = vunpack.c.h.b16 %v2647
    %v2826 = vunpack.c.l.b16 %v2648
    %v2827 = vunpack.c.h.b16 %v2648
    %v2828 = vunpack.c.l.b16 %v2649
    %v2829 = vunpack.c.h.b16 %v2649
    %v2830 = vunpack.c.l.b16 %v2650
    %v2831 = vunpack.c.h.b16 %v2650
    %v2832 = vunpack.c.l.b16 %v2651
    %v2833 = vunpack.c.h.b16 %v2651
    %v2834 = vunpack.c.l.b16 %v2652
    %v2835 = vunpack.c.h.b16 %v2652
    %v2836 = vunpack.c.l.b16 %v2653
    %v2837 = vunpack.c.h.b16 %v2653
    %v2838 = vunpack.c.l.b16 %v2654
    %v2839 = vunpack.c.h.b16 %v2654
    %v2840 = vunpack.c.l.b16 %v2655
    %v2841 = vunpack.c.h.b16 %v2655
    %v2842 = vunpack.c.l.b16 %v2656
    %v2843 = vunpack.c.h.b16 %v2656
    %v2844 = vunpack.c.l.b16 %v2657
    %v2845 = vunpack.c.h.b16 %v2657
    %v2846 = vunpack.c.l.b16 %v2658
    %v2847 = vunpack.c.h.b16 %v2658
    %v2848 = vunpack.c.l.b16 %v2659
    %v2849 = vunpack.c.h.b16 %v2659
    %v2850 = vunpack.c.l.b16 %v2660
    %v2851 = vunpack.c.h.b16 %v2660
    %v2852 = vunpack.c.l.b16 %v2661
    %v2853 = vunpack.c.h.b16 %v2661
    %v2854 = vunpack.c.l.b16 %v2662
    %v2855 = vunpack.c.h.b16 %v2662
    %v2856 = vunpack.c.l.b16 %v2663
    %v2857 = vunpack.c.h.b16 %v2663
    %v2858 = vunpack.c.l.b16 %v2664
    %v2859 = vunpack.c.h.b16 %v2664
    %v2860 = vunpack.c.l.b16 %v2665
    %v2861 = vunpack.c.h.b16 %v2665
    %v2862 = vunpack.c.l.b16 %v2666
    %v2863 = vunpack.c.h.b16 %v2666
    %v2864 = vunpack.c.l.b16 %v2667
    %v2865 = vunpack.c.h.b16 %v2667
    %v2866 = vunpack.c.l.b16 %v2668
    %v2867 = vunpack.c.h.b16 %v2668
    %v2868 = vunpack.c.l.b16 %v2669
    %v2869 = vunpack.c.h.b16 %v2669
    %v2870 = vunpack.c.l.b16 %v2670
    %v2871 = vunpack.c.h.b16 %v2670
    %v2872 = vunpack.c.l.b16 %v2671
    %v2873 = vunpack.c.h.b16 %v2671
    %v2874 = vunpack.c.l.b16 %v2672
    %v2875 = vunpack.c.h.b16 %v2672
    %v2876 = vunpack.c.l.b16 %v2673
    %v2877 = vunpack.c.h.b16 %v2673
    %v2878 = vunpack.c.l.b16 %v2674
    %v2879 = vunpack.c.h.b16 %v2674
    %v2880 = vunpack.c.l.b16 %v2675
    %v2881 = vunpack.c.h.b16 %v2675
    %v2882 = vunpack.c.l.b16 %v2676
    %v2883 = vunpack.c.h.b16 %v2676
    %v2884 = vunpack.c.l.b16 %v2677
    %v2885 = vunpack.c.h.b16 %v2677
    %v2886 = vunpack.c.l.b16 %v2678
    %v2887 = vunpack.c.h.b16 %v2678
    %v2888 = vunpack.c.l.b16 %v2679
    %v2889 = vunpack.c.h.b16 %v2679
    %v2890 = vunpack.c.l.b16 %v2680
    %v2891 = vunpack.c.h.b16 %v2680
    %v2892 = vunpack.c.l.b16 %v2681
    %v2893 = vunpack.c.h.b16 %v2681
    %v2894 = vunpack.c.l.b16 %v2682
    %v2895 = vunpack.c.h.b16 %v2682
    %v2896 = vunpack.c.l.b16 %v2683
    %v2897 = vunpack.c.h.b16 %v2683
    %v2898 = vunpack.c.l.b16 %v2684
    %v2899 = vunpack.c.h.b16 %v2684
    %v2900 = vunpack.c.l.b16 %v2685
    %v2901 = vunpack.c.h.b16 %v2685
    %v2902 = vunpack.c.l.b16 %v2686
    %v2903 = vunpack.c.h.b16 %v2686
    %v2904 = vunpack.c.l.b16 %v2687
    %v2905 = vunpack.c.h.b16 %v2687
    %v2906 = vunpack.c.l.b16 %v2688
    %v2907 = vunpack.c.h.b16 %v2688
    %v2908 = vunpack.c.l.b16 %v2689
    %v2909 = vunpack.c.h.b16 %v2689
    %v2910 = vunpack.c.l.b16 %v2690
    %v2911 = vunpack.c.h.b16 %v2690
    %v2912 = vunpack.c.l.b16 %v2691
    %v2913 = vunpack.c.h.b16 %v2691
    %v2914 = vunpack.c.l.b16 %v2692
    %v2915 = vunpack.c.h.b16 %v2692
    %v2916 = vunpack.c.l.b16 %v2693
    %v2917 = vunpack.c.h.b16 %v2693
    %v2918 = vunpack.c.l.b16 %v2694
    %v2919 = vunpack.c.h.b16 %v2694
    %v2920 = vunpack.c.l.b16 %v2695
    %v2921 = vunpack.c.h.b16 %v2695
    %v2922 = vunpack.c.l.b16 %v2696
    %v2923 = vunpack.c.h.b16 %v2696
    %v2924 = vunpack.c.l.b16 %v2697
    %v2925 = vunpack.c.h.b16 %v2697
    %v2926 = vunpack.c.l.b16 %v2698
    %v2927 = vunpack.c.h.b16 %v2698
    %v2928 = vunpack.c.l.b16 %v2699
    %v2929 = vunpack.c.h.b16 %v2699
    %v2930 = vunpack.c.l.b16 %v2700
    %v2931 = vunpack.c.h.b16 %v2700
    %v2932 = vunpack.c.l.b16 %v2701
    %v2933 = vunpack.c.h.b16 %v2701
    %v2934 = vunpack.c.l.b16 %v2702
    %v2935 = vunpack.c.h.b16 %v2702
    %v2936 = vunpack.c.l.b16 %v2703
    %v2937 = vunpack.c.h.b16 %v2703
    %v2938 = vpack.c.b16 %v2812, %v2810
    %v2939 = vpack.c.b16 %v2813, %v2811
    %v2940 = vpack.c.b16 %v2816, %v2814
    %v2941 = vpack.c.b16 %v2817, %v2815
    %v2942 = vpack.c.b16 %v2820, %v2818
    %v2943 = vpack.c.b16 %v2821, %v2819
    %v2944 = vpack.c.b16 %v2824, %v2822
    %v2945 = vpack.c.b16 %v2825, %v2823
    %v2946 = vpack.c.b16 %v2828, %v2826
    %v2947 = vpack.c.b16 %v2829, %v2827
    %v2948 = vpack.c.b16 %v2832, %v2830
    %v2949 = vpack.c.b16 %v2833, %v2831
    %v2950 = vpack.c.b16 %v2836, %v2834
    %v2951 = vpack.c.b16 %v2837, %v2835
    %v2952 = vpack.c.b16 %v2840, %v2838
    %v2953 = vpack.c.b16 %v2841, %v2839
    %v2954 = vpack.c.b16 %v2844, %v2842
    %v2955 = vpack.c.b16 %v2845, %v2843
    %v2956 = vpack.c.b16 %v2848, %v2846
    %v2957 = vpack.c.b16 %v2849, %v2847
    %v2958 = vpack.c.b16 %v2852, %v2850
    %v2959 = vpack.c.b16 %v2853, %v2851
    %v2960 = vpack.c.b16 %v2856, %v2854
    %v2961 = vpack.c.b16 %v2857, %v2855
    %v2962 = vpack.c.b16 %v2860, %v2858
    %v2963 = vpack.c.b16 %v2861, %v2859
    %v2964 = vpack.c.b16 %v2864, %v2862
    %v2965 = vpack.c.b16 %v2865, %v2863
    %v2966 = vpack.c.b16 %v2868, %v2866
    %v2967 = vpack.c.b16 %v2869, %v2867
    %v2968 = vpack.c.b16 %v2872, %v2870
    %v2969 = vpack.c.b16 %v2873, %v2871
    %v2970 = vpack.c.b16 %v2876, %v2874
    %v2971 = vpack.c.b16 %v2877, %v2875
    %v2972 = vpack.c.b16 %v2880, %v2878
    %v2973 = vpack.c.b16 %v2881, %v2879
    %v2974 = vpack.c.b16 %v2884, %v2882
    %v2975 = vpack.c.b16 %v2885, %v2883
    %v2976 = vpack.c.b16 %v2888, %v2886
    %v2977 = vpack.c.b16 %v2889, %v2887
    %v2978 = vpack.c.b16 %v2892, %v2890
    %v2979 = vpack.c.b16 %v2893, %v2891
    %v2980 = vpack.c.b16 %v2896, %v2894
    %v2981 = vpack.c.b16 %v2897, %v2895
    %v2982 = vpack.c.b16 %v2900, %v2898
    %v2983 = vpack.c.b16 %v2901, %v2899
    %v2984 = vpack.c.b16 %v2904, %v2902
    %v2985 = vpack.c.b16 %v2905, %v2903
    %v2986 = vpack.c.b16 %v2908, %v2906
    %v2987 = vpack.c.b16 %v2909, %v2907
    %v2988 = vpack.c.b16 %v2912, %v2910
    %v2989 = vpack.c.b16 %v2913, %v2911
    %v2990 = vpack.c.b16 %v2916, %v2914
    %v2991 = vpack.c.b16 %v2917, %v2915
    %v2992 = vpack.c.b16 %v2920, %v2918
    %v2993 = vpack.c.b16 %v2921, %v2919
    %v2994 = vpack.c.b16 %v2924, %v2922
    %v2995 = vpack.c.b16 %v2925, %v2923
    %v2996 = vpack.c.b16 %v2928, %v2926
    %v2997 = vpack.c.b16 %v2929, %v2927
    %v2998 = vpack.c.b16 %v2932, %v2930
    %v2999 = vpack.c.b16 %v2933, %v2931
    %v3000 = vpack.c.b16 %v2936, %v2934
    %v3001 = vpack.c.b16 %v2937, %v2935
    %3066 = vmatprep.subr.bf16.mxu0 %v2939
    %3067 = vmatpush1.bf16.msra.mxu0 %v2938
    %3068 = vmatprep.subr.bf16.mxu0 %v2941
    %3069 = vmatpush1.bf16.msra.mxu0 %v2940
    %3070 = vmatprep.subr.bf16.mxu0 %v2943
    %3071 = vmatpush1.bf16.msra.mxu0 %v2942
    %3072 = vmatprep.subr.bf16.mxu0 %v2945
    %3073 = vmatpush1.bf16.msra.mxu0 %v2944
    %3074 = vmatprep.subr.bf16.mxu0 %v2947
    %3075 = vmatpush1.bf16.msra.mxu0 %v2946
    %3076 = vmatprep.subr.bf16.mxu0 %v2949
    %3077 = vmatpush1.bf16.msra.mxu0 %v2948
    %3078 = vmatprep.subr.bf16.mxu0 %v2951
    %3079 = vmatpush1.bf16.msra.mxu0 %v2950
    %3080 = vmatprep.subr.bf16.mxu0 %v2953
    %3081 = vmatpush1.bf16.msra.mxu0 %v2952
    %3082 = vmatprep.subr.bf16.mxu0 %v2955
    %3083 = vmatpush1.bf16.msra.mxu0 %v2954
    %3084 = vmatprep.subr.bf16.mxu0 %v2957
    %3085 = vmatpush1.bf16.msra.mxu0 %v2956
    %3086 = vmatprep.subr.bf16.mxu0 %v2959
    %3087 = vmatpush1.bf16.msra.mxu0 %v2958
    %3088 = vmatprep.subr.bf16.mxu0 %v2961
    %3089 = vmatpush1.bf16.msra.mxu0 %v2960
    %3090 = vmatprep.subr.bf16.mxu0 %v2963
    %3091 = vmatpush1.bf16.msra.mxu0 %v2962
    %3092 = vmatprep.subr.bf16.mxu0 %v2965
    %3093 = vmatpush1.bf16.msra.mxu0 %v2964
    %3094 = vmatprep.subr.bf16.mxu0 %v2967
    %3095 = vmatpush1.bf16.msra.mxu0 %v2966
    %3096 = vmatprep.subr.bf16.mxu0 %v2969
    %3097 = vmatpush1.bf16.msra.mxu0 %v2968
    %3098 = vmatprep.mubr.bf16.mxu0 %v2739
    %3099 = vmatmul.mubr.bf16.gmra.mrb[0].mxu0 %v2732
    %v3100 = vpop.f32.mrb[0].mxu0
    %v3101 = vadd.f32 %v2710, %v3100
    %v3102 = vpop.f32.mrb[0].mxu0
    %v3103 = vadd.f32 %v2714, %v3102
    %v3104 = vpop.f32.mrb[0].mxu0
    %v3105 = vpop.f32.mrb[0].mxu0
    %3106 = vdwg.mxu0
    %3107 = vmatprep.subr.bf16.mxu0 %v2971
    %3108 = vmatpush1.bf16.msra.mxu0 %v2970
    %3109 = vmatprep.subr.bf16.mxu0 %v2973
    %3110 = vmatpush1.bf16.msra.mxu0 %v2972
    %3111 = vmatprep.subr.bf16.mxu0 %v2975
    %3112 = vmatpush1.bf16.msra.mxu0 %v2974
    %3113 = vmatprep.subr.bf16.mxu0 %v2977
    %3114 = vmatpush1.bf16.msra.mxu0 %v2976
    %3115 = vmatprep.subr.bf16.mxu0 %v2979
    %3116 = vmatpush1.bf16.msra.mxu0 %v2978
    %3117 = vmatprep.subr.bf16.mxu0 %v2981
    %3118 = vmatpush1.bf16.msra.mxu0 %v2980
    %3119 = vmatprep.subr.bf16.mxu0 %v2983
    %3120 = vmatpush1.bf16.msra.mxu0 %v2982
    %3121 = vmatprep.subr.bf16.mxu0 %v2985
    %3122 = vmatpush1.bf16.msra.mxu0 %v2984
    %3123 = vmatprep.subr.bf16.mxu0 %v2987
    %3124 = vmatpush1.bf16.msra.mxu0 %v2986
    %3125 = vmatprep.subr.bf16.mxu0 %v2989
    %3126 = vmatpush1.bf16.msra.mxu0 %v2988
    %3127 = vmatprep.subr.bf16.mxu0 %v2991
    %3128 = vmatpush1.bf16.msra.mxu0 %v2990
    %3129 = vmatprep.subr.bf16.mxu0 %v2993
    %3130 = vmatpush1.bf16.msra.mxu0 %v2992
    %3131 = vmatprep.subr.bf16.mxu0 %v2995
    %3132 = vmatpush1.bf16.msra.mxu0 %v2994
    %3133 = vmatprep.subr.bf16.mxu0 %v2997
    %3134 = vmatpush1.bf16.msra.mxu0 %v2996
    %3135 = vmatprep.subr.bf16.mxu0 %v2999
    %3136 = vmatpush1.bf16.msra.mxu0 %v2998
    %3137 = vmatprep.subr.bf16.mxu0 %v3001
    %3138 = vmatpush1.bf16.msra.mxu0 %v3000
    %3139 = vmatprep.mubr.bf16.mxu0 %v2741
    %3140 = vmatmul.mubr.bf16.gmra.mrb[0].mxu0 %v2740
    %v3141 = vpop.f32.mrb[0].mxu0
    %v3142 = vadd.f32 %v3101, %v3141
    %v3143 = vpop.f32.mrb[0].mxu0
    %v3144 = vadd.f32 %v3103, %v3143
    %v3145 = vpop.f32.mrb[0].mxu0
    %v3146 = vpop.f32.mrb[0].mxu0
    %3147 = vdwg.mxu0
    %v3148 = vmax.f32 %v3142, 0.0
    %v3149 = vmax.f32 %v3144, 0.0
    %v3152 = vcombine.low %v3148, %v3149
    %v3154 = vunpack.c.l.s4 1983009808
    %v3155 = vunpack.c.0.s8 %v3154
    %v3156 = vlaneseq
    %v3157 = vshrl.u32 %v3156, 7
    %v3158 = vsub.s32 %v3155, %v3157
    %v3159 = vrot.slane %v3152, %v3158
    %3161 = vst [vmem:[#allocation2 + $0x14] sm:$0xf] %v3159
    // Predicated region
    $region14: #{pcb_rpp_forward.1} parent=1 // pred_check
      _
    $region15: #{pcb_rpp_forward.1} parent=1 // pred_check_branch
      %3163 = sbr.rel (0) target = $region17
    $region16: #{pcb_rpp_forward.1} parent=1 // pred_region
      %s3165 = ssub.s32 384, 384
      %3166 = vsyncadd [#allocation3], %s3165
      %s3168 = sshll.u32 [#allocation2], 4
      %s3169 = int_to_ptr.vmem [resolvable:$true] %s3168
      %3171 = dma.vmem_to_hbm [thread:$0]  %s3169, 384, %s3, [#allocation3]
    $region17: #{pcb_rpp_forward.1} parent=1 // pred_fallthru
      _
    // Predicated region
    $region18: #{pcb_rpp_forward.1} parent=1 // pred_check
      _
    $region19: #{pcb_rpp_forward.1} parent=1 // pred_check_branch
      %3173 = sbr.rel (0) target = $region21
    $region20: #{pcb_rpp_forward.1} parent=1 // pred_region
      %3174 = dma.done [#allocation3], 384
    $region21: #{pcb_rpp_forward.1} parent=1 // pred_fallthru
      _
    %3175 = vsyncpa [#allocation3], 1

</llo_original>
